<compile_context>
chip_gen: v7x
topology: tpu7x:2x2x1
jax: 0.10.0
libtpu: 0.0.40
codegen_flags: <defaults>
</compile_context>

<pallas_src>
import functools

import jax
import jax.numpy as jnp
from jax import lax
from jax.experimental import pallas as pl
from jax.experimental.pallas import tpu as pltpu

# ---------------------------------------------------------------------------
# Module hyper-parameters (from the PyTorch script)
# ---------------------------------------------------------------------------
IN_CHANNELS = 3
OUT_CHANNELS = 64
KERNEL_SIZE = (3, 5)
STRIDE = 1
PADDING = 0
DILATION = 1
GROUPS = 1
USE_BIAS = False

LANE = 128


# ---------------------------------------------------------------------------
# Kernel
# ---------------------------------------------------------------------------
def _conv2d_kernel(x_ref, w_ref, o_ref, *, bb, cin, kh_size, tile_oh,
                   num_oh_tiles, stride, dilation):
    """Fused conv-as-matmul over a (bb images) x (tile_oh output rows) block.

    x_ref: (bb, Cin, Hp, Wpad)       NCHW input block (whole padded image)
    w_ref: (Cin*KH*Wpad, OW*Cout)    banded expanded weight (built in wrapper)
    o_ref: (bb, tile_oh, OW*Cout)    lane-dense output tile
    """
    x = x_ref[...]
    row_span = (tile_oh - 1) * stride + 1
    win_rows = row_span + (kh_size - 1) * dilation

    if num_oh_tiles == 1:
        # Static fast path: the tile covers all output rows (row0 == 0).
        win = x
    else:
        row0 = pl.program_id(1) * (tile_oh * stride)
        win = lax.dynamic_slice_in_dim(x, row0, win_rows, axis=2)

    # Build the LHS: one (tile_oh, Wpad) slab per (image, channel, kh-tap).
    # Every slab spans a multiple of 128 lanes, so the lane-axis concat is a
    # free vreg placement (no lane rotates / masked selects).
    per_image = []
    for b in range(bb):                      # bb is a small static int
        chunks = []
        for c in range(cin):
            for kh in range(kh_size):
                r0 = kh * dilation
                sl = win[b, c, r0:r0 + row_span, :]
                if stride > 1:
                    sl = sl[::stride]
                chunks.append(sl)            # (tile_oh, Wpad)
        per_image.append(jnp.concatenate(chunks, axis=-1))   # (tile_oh, K)
    lhs = per_image[0] if bb == 1 else jnp.concatenate(per_image, axis=0)

    # ONE MXU matmul for the whole block: (bb*tile_oh, K) @ (K, OW*Cout).
    out = jnp.dot(lhs, w_ref[...], preferred_element_type=jnp.float32)

    for b in range(bb):
        o_ref[b] = out[b * tile_oh:(b + 1) * tile_oh, :].astype(o_ref.dtype)


# ---------------------------------------------------------------------------
# Wrapper-side helpers
# ---------------------------------------------------------------------------
def expand_conv_weight(weight_oihw, wpad, ow_count, stride, dilation):
    """Banded (Cin*KH*Wpad, OW*Cout) matmul weight from OIHW conv weights.

    wexp[(c, kh, p), (ow, co)] = weight[co, c, kh, kw]
        iff p == ow*stride + kw*dilation  (exact zeros elsewhere).

    Depends only on the weights and static geometry — precompute / cache it
    and pass via `expanded_weight=` to avoid rebuilding every forward.
    """
    cout, cin, kh_sz, kw_sz = weight_oihw.shape
    wt = jnp.transpose(weight_oihw, (1, 2, 3, 0))          # (Cin, KH, KW, Cout)
    p = jnp.arange(wpad)[:, None, None]
    ow = jnp.arange(ow_count)[None, :, None]
    kw = jnp.arange(kw_sz)[None, None, :]
    sel = (p == ow * stride + kw * dilation).astype(weight_oihw.dtype)
    wexp = jnp.einsum('pwk,chko->chpwo', sel, wt)          # (Cin,KH,Wpad,OW,Cout)
    return wexp.reshape(cin * kh_sz * wpad, ow_count * cout)


def _tensorcores_per_chip():
    """2 on v7x (2 TensorCores/chip), else 1.  Perf-only; never changes results."""
    try:
        kind = jax.devices()[0].device_kind.lower()
    except Exception:
        return 1
    return 2 if "v7" in kind else 1


def _pick_batch_block(batch):
    if batch <= 1:
        return 1
    if _tensorcores_per_chip() > 1:
        return 1            # shard the batch across TensorCores
    if batch < 8:
        return batch        # fold into one step: no per-step pipeline overhead
    for cand in (8, 4, 2):
        if batch % cand == 0:
            return cand     # keep DMA/compute overlapping, bounded unrolling
    return 1


def _pick_oh_tile(oh):
    if oh <= 256:
        return oh
    for cand in (256, 128, 64, 32, 16, 8):
        if oh % cand == 0:
            return cand
    return oh               # prime-ish OH: fall back to a single tile


# ---------------------------------------------------------------------------
# Public entry point (matches torch.nn.functional.conv2d semantics)
# ---------------------------------------------------------------------------
def conv2d_pallas(x_nchw, weight_oihw, bias=None, *, stride=STRIDE,
                  padding=PADDING, dilation=DILATION, groups=GROUPS,
                  expanded_weight=None):
    assert groups == 1, "groups != 1 not implemented"
    B, Cin, H, W = x_nchw.shape
    Cout, Cin_w, KH, KW = weight_oihw.shape
    assert Cin == Cin_w

    Hp = H + 2 * padding
    Wc = W + 2 * padding                                   # conv-padded width
    OH = (Hp - dilation * (KH - 1) - 1) // stride + 1
    OW = (Wc - dilation * (KW - 1) - 1) // stride + 1
    Wpad = ((Wc + LANE - 1) // LANE) * LANE                # lane-align W axis

    # One pad: conv padding + zero lane-padding on the right of W.
    x = jnp.pad(x_nchw, ((0, 0), (0, 0),
                         (padding, padding),
                         (padding, padding + (Wpad - Wc))))

    if expanded_weight is None:
        expanded_weight = expand_conv_weight(weight_oihw, Wpad, OW,
                                             stride, dilation)
    w = expanded_weight
    K, N = w.shape                                         # K=Cin*KH*Wpad, N=OW*Cout

    bb = _pick_batch_block(B)
    tile_oh = _pick_oh_tile(OH)
    num_oh_tiles = OH // tile_oh
    grid = (B // bb, num_oh_tiles)

    kernel = functools.partial(
        _conv2d_kernel, bb=bb, cin=Cin, kh_size=KH, tile_oh=tile_oh,
        num_oh_tiles=num_oh_tiles, stride=stride, dilation=dilation)

    itemsize = x.dtype.itemsize
    # Honest estimate of the work actually executed (dense banded matmul).
    flops = 2 * B * OH * K * N
    bytes_accessed = itemsize * (x.size + B * OH * N) + w.dtype.itemsize * w.size

    x_block_bytes = bb * Cin * Hp * Wpad * itemsize
    o_block_bytes = bb * tile_oh * N * itemsize
    w_bytes = K * N * w.dtype.itemsize
    vmem_need = 2 * (x_block_bytes + o_block_bytes + w_bytes) + (8 << 20)
    vmem_limit = int(min(max(vmem_need, 32 << 20), 64 << 20))

    out = pl.pallas_call(
        kernel,
        out_shape=jax.ShapeDtypeStruct((B, OH, N), x_nchw.dtype),
        grid=grid,
        in_specs=[
            pl.BlockSpec((bb, Cin, Hp, Wpad), lambda b, t: (b, 0, 0, 0)),
            pl.BlockSpec((K, N), lambda b, t: (0, 0)),
        ],
        out_specs=pl.BlockSpec((bb, tile_oh, N), lambda b, t: (b, t, 0)),
        compiler_params=pltpu.CompilerParams(
            dimension_semantics=("parallel", "parallel"),
            vmem_limit_bytes=vmem_limit),
        cost_estimate=pl.CostEstimate(flops=flops, transcendentals=0,
                                      bytes_accessed=bytes_accessed),
    )(x, w)

    # (B, OH, OW*Cout) -> (B, OH, OW, Cout) -> NCHW  (boundary glue).
    out = out.reshape(B, OH, OW, Cout)
    out = jnp.transpose(out, (0, 3, 1, 2))
    if bias is not None:
        out = out + bias[None, :, None, None]
    return out


def init_weight(key, out_channels, in_channels, kernel_size, dtype=jnp.float32):
    """Deterministic init mimicking nn.Conv2d default (uniform +-1/sqrt(fan_in))."""
    kh, kw = kernel_size
    fan_in = in_channels * kh * kw
    bound = 1.0 / jnp.sqrt(jnp.asarray(fan_in, dtype))
    return jax.random.uniform(key, (out_channels, in_channels, kh, kw),
                              dtype=dtype, minval=-bound, maxval=bound)


if __name__ == "__main__":
    key = jax.random.PRNGKey(0)
    kx, kw_key = jax.random.split(key)

    # Small shapes consistent with the module: batch=2, Cin=3, square 16x16 input.
    B, H, W = 2, 16, 16
    x = jax.random.normal(kx, (B, IN_CHANNELS, H, W), dtype=jnp.float32)
    weight = init_weight(kw_key, OUT_CHANNELS, IN_CHANNELS, KERNEL_SIZE)

    out = conv2d_pallas(x, weight)
    out = jax.block_until_ready(out)

    # Reference check against XLA's conv (same semantics as F.conv2d, bias=None).
    ref = jax.lax.conv_general_dilated(
        x, weight,
        window_strides=(STRIDE, STRIDE),
        padding=[(PADDING, PADDING), (PADDING, PADDING)],
        rhs_dilation=(DILATION, DILATION),
        dimension_numbers=("NCHW", "OIHW", "NCHW"),
        feature_group_count=GROUPS)
    assert out.shape == ref.shape == (B, OUT_CHANNELS, H - 3 + 1, W - 5 + 1)
    assert jnp.allclose(out, ref, atol=1e-4, rtol=1e-4), "mismatch vs reference"

    print("KERNEL_OK")
</pallas_src>

<mosaic_0001>
module attributes {stable_mosaic.version = 11 : i64} {
  func.func @_conv2d_kernel(%arg0: i32, %arg1: i32, %arg2: memref<2x3x16x128xf32, #tpu.memory_space<vmem>>, %arg3: memref<1152x768xf32, #tpu.memory_space<vmem>>, %arg4: memref<2x14x768xf32, #tpu.memory_space<vmem>>) attributes {dimension_semantics = [#tpu.dimension_semantics<parallel>, #tpu.dimension_semantics<parallel>], iteration_bounds = array<i64: 1, 1>, scalar_prefetch = 0 : i64, scratch_operands = 0 : i64, tpu.core_type = #tpu.core_type<tc>, window_params = [{transform_indices = @transform_0, window_bounds = array<i64: 2, 3, 16, 128>}, {pipeline_mode = #tpu.pipeline_mode<synchronous>, transform_indices = @transform_1, window_bounds = array<i64: 1152, 768>}, {transform_indices = @transform_2, window_bounds = array<i64: 2, 14, 768>}]} {
    %c0 = arith.constant 0 : index
    %c0_0 = arith.constant 0 : index
    %c0_1 = arith.constant 0 : index
    %c0_2 = arith.constant 0 : index
    %0 = vector.load %arg2[%c0, %c0_0, %c0_1, %c0_2] : memref<2x3x16x128xf32, #tpu.memory_space<vmem>>, vector<2x3x16x128xf32>
    %1 = vector.extract_strided_slice %0 {offsets = [0, 0, 0, 0], sizes = [1, 1, 14, 128], strides = [1, 1, 1, 1]} : vector<2x3x16x128xf32> to vector<1x1x14x128xf32>
    %2 = vector.shape_cast %1 : vector<1x1x14x128xf32> to vector<14x128xf32>
    %3 = vector.extract_strided_slice %0 {offsets = [0, 0, 1, 0], sizes = [1, 1, 14, 128], strides = [1, 1, 1, 1]} : vector<2x3x16x128xf32> to vector<1x1x14x128xf32>
    %4 = vector.shape_cast %3 : vector<1x1x14x128xf32> to vector<14x128xf32>
    %5 = vector.extract_strided_slice %0 {offsets = [0, 0, 2, 0], sizes = [1, 1, 14, 128], strides = [1, 1, 1, 1]} : vector<2x3x16x128xf32> to vector<1x1x14x128xf32>
    %6 = vector.shape_cast %5 : vector<1x1x14x128xf32> to vector<14x128xf32>
    %7 = vector.extract_strided_slice %0 {offsets = [0, 1, 0, 0], sizes = [1, 1, 14, 128], strides = [1, 1, 1, 1]} : vector<2x3x16x128xf32> to vector<1x1x14x128xf32>
    %8 = vector.shape_cast %7 : vector<1x1x14x128xf32> to vector<14x128xf32>
    %9 = vector.extract_strided_slice %0 {offsets = [0, 1, 1, 0], sizes = [1, 1, 14, 128], strides = [1, 1, 1, 1]} : vector<2x3x16x128xf32> to vector<1x1x14x128xf32>
    %10 = vector.shape_cast %9 : vector<1x1x14x128xf32> to vector<14x128xf32>
    %11 = vector.extract_strided_slice %0 {offsets = [0, 1, 2, 0], sizes = [1, 1, 14, 128], strides = [1, 1, 1, 1]} : vector<2x3x16x128xf32> to vector<1x1x14x128xf32>
    %12 = vector.shape_cast %11 : vector<1x1x14x128xf32> to vector<14x128xf32>
    %13 = vector.extract_strided_slice %0 {offsets = [0, 2, 0, 0], sizes = [1, 1, 14, 128], strides = [1, 1, 1, 1]} : vector<2x3x16x128xf32> to vector<1x1x14x128xf32>
    %14 = vector.shape_cast %13 : vector<1x1x14x128xf32> to vector<14x128xf32>
    %15 = vector.extract_strided_slice %0 {offsets = [0, 2, 1, 0], sizes = [1, 1, 14, 128], strides = [1, 1, 1, 1]} : vector<2x3x16x128xf32> to vector<1x1x14x128xf32>
    %16 = vector.shape_cast %15 : vector<1x1x14x128xf32> to vector<14x128xf32>
    %17 = vector.extract_strided_slice %0 {offsets = [0, 2, 2, 0], sizes = [1, 1, 14, 128], strides = [1, 1, 1, 1]} : vector<2x3x16x128xf32> to vector<1x1x14x128xf32>
    %18 = vector.shape_cast %17 : vector<1x1x14x128xf32> to vector<14x128xf32>
    %19 = tpu.concatenate %2, %4, %6, %8, %10, %12, %14, %16, %18 in 1 : vector<14x128xf32>, vector<14x128xf32>, vector<14x128xf32>, vector<14x128xf32>, vector<14x128xf32>, vector<14x128xf32>, vector<14x128xf32>, vector<14x128xf32>, vector<14x128xf32> -> vector<14x1152xf32>
    %20 = vector.extract_strided_slice %0 {offsets = [1, 0, 0, 0], sizes = [1, 1, 14, 128], strides = [1, 1, 1, 1]} : vector<2x3x16x128xf32> to vector<1x1x14x128xf32>
    %21 = vector.shape_cast %20 : vector<1x1x14x128xf32> to vector<14x128xf32>
    %22 = vector.extract_strided_slice %0 {offsets = [1, 0, 1, 0], sizes = [1, 1, 14, 128], strides = [1, 1, 1, 1]} : vector<2x3x16x128xf32> to vector<1x1x14x128xf32>
    %23 = vector.shape_cast %22 : vector<1x1x14x128xf32> to vector<14x128xf32>
    %24 = vector.extract_strided_slice %0 {offsets = [1, 0, 2, 0], sizes = [1, 1, 14, 128], strides = [1, 1, 1, 1]} : vector<2x3x16x128xf32> to vector<1x1x14x128xf32>
    %25 = vector.shape_cast %24 : vector<1x1x14x128xf32> to vector<14x128xf32>
    %26 = vector.extract_strided_slice %0 {offsets = [1, 1, 0, 0], sizes = [1, 1, 14, 128], strides = [1, 1, 1, 1]} : vector<2x3x16x128xf32> to vector<1x1x14x128xf32>
    %27 = vector.shape_cast %26 : vector<1x1x14x128xf32> to vector<14x128xf32>
    %28 = vector.extract_strided_slice %0 {offsets = [1, 1, 1, 0], sizes = [1, 1, 14, 128], strides = [1, 1, 1, 1]} : vector<2x3x16x128xf32> to vector<1x1x14x128xf32>
    %29 = vector.shape_cast %28 : vector<1x1x14x128xf32> to vector<14x128xf32>
    %30 = vector.extract_strided_slice %0 {offsets = [1, 1, 2, 0], sizes = [1, 1, 14, 128], strides = [1, 1, 1, 1]} : vector<2x3x16x128xf32> to vector<1x1x14x128xf32>
    %31 = vector.shape_cast %30 : vector<1x1x14x128xf32> to vector<14x128xf32>
    %32 = vector.extract_strided_slice %0 {offsets = [1, 2, 0, 0], sizes = [1, 1, 14, 128], strides = [1, 1, 1, 1]} : vector<2x3x16x128xf32> to vector<1x1x14x128xf32>
    %33 = vector.shape_cast %32 : vector<1x1x14x128xf32> to vector<14x128xf32>
    %34 = vector.extract_strided_slice %0 {offsets = [1, 2, 1, 0], sizes = [1, 1, 14, 128], strides = [1, 1, 1, 1]} : vector<2x3x16x128xf32> to vector<1x1x14x128xf32>
    %35 = vector.shape_cast %34 : vector<1x1x14x128xf32> to vector<14x128xf32>
    %36 = vector.extract_strided_slice %0 {offsets = [1, 2, 2, 0], sizes = [1, 1, 14, 128], strides = [1, 1, 1, 1]} : vector<2x3x16x128xf32> to vector<1x1x14x128xf32>
    %37 = vector.shape_cast %36 : vector<1x1x14x128xf32> to vector<14x128xf32>
    %38 = tpu.concatenate %21, %23, %25, %27, %29, %31, %33, %35, %37 in 1 : vector<14x128xf32>, vector<14x128xf32>, vector<14x128xf32>, vector<14x128xf32>, vector<14x128xf32>, vector<14x128xf32>, vector<14x128xf32>, vector<14x128xf32>, vector<14x128xf32> -> vector<14x1152xf32>
    %39 = tpu.concatenate %19, %38 in 0 : vector<14x1152xf32>, vector<14x1152xf32> -> vector<28x1152xf32>
    %c0_3 = arith.constant 0 : index
    %c0_4 = arith.constant 0 : index
    %40 = vector.load %arg3[%c0_3, %c0_4] : memref<1152x768xf32, #tpu.memory_space<vmem>>, vector<1152x768xf32>
    %cst = arith.constant dense<0.000000e+00> : vector<28x768xf32>
    %41 = tpu.matmul %39, %40, %cst {dimension_numbers = #tpu.dot_dimension_numbers<[1], [0], [0], [1], [0, 0, 1, 1], [], []>} : vector<28x1152xf32>, vector<1152x768xf32>, vector<28x768xf32> -> vector<28x768xf32>
    %42 = vector.extract_strided_slice %41 {offsets = [0, 0], sizes = [14, 768], strides = [1, 1]} : vector<28x768xf32> to vector<14x768xf32>
    %c0_5 = arith.constant 0 : index
    %c0_6 = arith.constant 0 : index
    %c0_7 = arith.constant 0 : index
    %43 = vector.load %arg4[%c0_5, %c0_6, %c0_7] : memref<2x14x768xf32, #tpu.memory_space<vmem>>, vector<1x14x768xf32>
    %44 = vector.shape_cast %43 : vector<1x14x768xf32> to vector<14x768xf32>
    %45 = vector.shape_cast %42 : vector<14x768xf32> to vector<1x14x768xf32>
    tpu.vector_store %arg4[%c0_5, %c0_6, %c0_7], %45 {strides = array<i32>} : memref<2x14x768xf32, #tpu.memory_space<vmem>>, vector<1x14x768xf32>,
    %46 = vector.extract_strided_slice %41 {offsets = [14, 0], sizes = [14, 768], strides = [1, 1]} : vector<28x768xf32> to vector<14x768xf32>
    %c1 = arith.constant 1 : index
    %c0_8 = arith.constant 0 : index
    %c0_9 = arith.constant 0 : index
    %47 = vector.load %arg4[%c1, %c0_8, %c0_9] : memref<2x14x768xf32, #tpu.memory_space<vmem>>, vector<1x14x768xf32>
    %48 = vector.shape_cast %47 : vector<1x14x768xf32> to vector<14x768xf32>
    %49 = vector.shape_cast %46 : vector<14x768xf32> to vector<1x14x768xf32>
    tpu.vector_store %arg4[%c1, %c0_8, %c0_9], %49 {strides = array<i32>} : memref<2x14x768xf32, #tpu.memory_space<vmem>>, vector<1x14x768xf32>,
    return
  }
  func.func @transform_0(%arg0: i32, %arg1: i32) -> (i32, i32, i32, i32) {
    %c0_i32 = arith.constant 0 : i32
    %c0_i32_0 = arith.constant 0 : i32
    %c0_i32_1 = arith.constant 0 : i32
    %c0_i32_2 = arith.constant 0 : i32
    return %arg0, %c0_i32, %c0_i32_0, %c0_i32_1 : i32, i32, i32, i32
  }
  func.func @transform_1(%arg0: i32, %arg1: i32) -> (i32, i32) {
    %c0_i32 = arith.constant 0 : i32
    %c0_i32_0 = arith.constant 0 : i32
    %c0_i32_1 = arith.constant 0 : i32
    return %c0_i32, %c0_i32_0 : i32, i32
  }
  func.func @transform_2(%arg0: i32, %arg1: i32) -> (i32, i32, i32) {
    %c0_i32 = arith.constant 0 : i32
    %c0_i32_0 = arith.constant 0 : i32
    return %arg0, %arg1, %c0_i32 : i32, i32, i32
  }
}

</mosaic_0001>

<llo_original>
// kernel: tpu_custom_call.1
$region0: #{tpu_custom_call.1}
  #allocation0 [shape = 'u32[]', space=smem, size = 0x4, offset = 0x4, fixed_abs, tag = 'smem constant byte address 0x4 - core index']
  #allocation1 [shape = 'u32[144,128]{1,0:T(1,128)}', space=vmem, size = 0x12000, scoped, tag = 'internal scratch']
  %s0 = inlined_call_operand.hbm [shape: f32[2,3,16,128], index: 0, kind: input, shape index: {}]
  %s1 = inlined_call_operand.hbm [shape: f32[1152,768], index: 1, kind: input, shape index: {}]
  %s2 = inlined_call_operand.vmem [shape: f32[2,14,768], index: 2, kind: output, shape index: {}]
  %s3 = sld [smem:[#allocation0]]
  $region26: #{tpu_custom_call.1} parent=0
    _
  %s5 = ssub.s32 1, %s3
  %s6 = scalar_select 0, %s5, %s3
  $region1: #{tpu_custom_call.1} parent=0
    #allocation2 [shape = 'u8[49152]{0}', space=vmem, size = 0xc000, scoped, tag = 'input window, operand 0, single buffered']
    #allocation3 [shape = 's32[1]{0}', space=sflag, size = 0x4, scoped, tag = 'scoped memory for tpu_custom_call.1']
    #allocation4 [shape = 'u8[3538944]{0}', space=vmem, size = 0x360000, scoped, tag = 'input window, operand 1, single buffered']
    #allocation5 [shape = 's32[1]{0}', space=sflag, size = 0x4, scoped, tag = 'scoped memory for tpu_custom_call.1']
    %7 = vsyncpa [#allocation3], 0
    %8 = vsyncpa [#allocation5], 0
    // Predicated region
    $region2: #{tpu_custom_call.1} parent=1 // pred_check
      _
    $region3: #{tpu_custom_call.1} parent=1 // pred_check_branch
      %10 = sbr.rel (0) target = $region5
    $region4: #{tpu_custom_call.1} parent=1 // pred_region
      %s12 = ssub.s32 1536, 1536
      %13 = vsyncadd [#allocation3], %s12
      %s14 = sshll.u32 [#allocation2], 4
      %s15 = int_to_ptr.vmem [resolvable:$true] %s14
      %20 = dma.hbm_to_vmem [thread:$0]  %s0, 1536, %s15, [#allocation3], 128, 128, 8
    $region5: #{tpu_custom_call.1} parent=1 // pred_fallthru
      _
    // Predicated region
    $region6: #{tpu_custom_call.1} parent=1 // pred_check
      _
    $region7: #{tpu_custom_call.1} parent=1 // pred_check_branch
      %22 = sbr.rel (0) target = $region9
    $region8: #{tpu_custom_call.1} parent=1 // pred_region
      %s24 = ssub.s32 110592, 110592
      %25 = vsyncadd [#allocation5], %s24
      %s26 = sshll.u32 [#allocation4], 4
      %s27 = int_to_ptr.vmem [resolvable:$true] %s26
      %32 = dma.hbm_to_vmem [thread:$0]  %s1, 110592, %s27, [#allocation5], 768, 768, 48
    $region9: #{tpu_custom_call.1} parent=1 // pred_fallthru
      _
    // Predicated region
    $region10: #{tpu_custom_call.1} parent=1 // pred_check
      _
    $region11: #{tpu_custom_call.1} parent=1 // pred_check_branch
      %34 = sbr.rel (0) target = $region13
    $region12: #{tpu_custom_call.1} parent=1 // pred_region
      %35 = dma.done [#allocation3], 1536
    $region13: #{tpu_custom_call.1} parent=1 // pred_fallthru
      _
    // Predicated region
    $region14: #{tpu_custom_call.1} parent=1 // pred_check
      _
    $region15: #{tpu_custom_call.1} parent=1 // pred_check_branch
      %37 = sbr.rel (0) target = $region17
    $region16: #{tpu_custom_call.1} parent=1 // pred_region
      %38 = dma.done [#allocation5], 110592
    $region17: #{tpu_custom_call.1} parent=1 // pred_fallthru
      _
    %v39 = vld [vmem:[#allocation2] sm:$0xff]
    %v40 = vld [vmem:[#allocation2 + $0x8] sm:$0xff]
    %v41 = vld [vmem:[#allocation2 + $0x10] sm:$0xff]
    %v42 = vld [vmem:[#allocation2 + $0x18] sm:$0xff]
    %v43 = vld [vmem:[#allocation2 + $0x20] sm:$0xff]
    %v44 = vld [vmem:[#allocation2 + $0x28] sm:$0xff]
    %v45 = vld [vmem:[#allocation2 + $0x30] sm:$0xff]
    %v46 = vld [vmem:[#allocation2 + $0x38] sm:$0xff]
    %v47 = vld [vmem:[#allocation2 + $0x40] sm:$0xff]
    %v48 = vld [vmem:[#allocation2 + $0x48] sm:$0xff]
    %v49 = vld [vmem:[#allocation2 + $0x50] sm:$0xff]
    %v50 = vld [vmem:[#allocation2 + $0x58] sm:$0xff]
    %vm53 = vcmask 1046528
    %v54 = vrot.slane %v39, 1
    %v55 = vrot.slane %v40, 1
    %v56 = vsel %vm53, %v54, %v55
    %vm59 = vcmask 1045504
    %v60 = vrot.slane %v39, 2
    %v61 = vrot.slane %v40, 2
    %v62 = vsel %vm59, %v60, %v61
    %v67 = vrot.slane %v41, 1
    %v68 = vrot.slane %v42, 1
    %v69 = vsel %vm53, %v67, %v68
    %v72 = vrot.slane %v41, 2
    %v73 = vrot.slane %v42, 2
    %v74 = vsel %vm59, %v72, %v73
    %v79 = vrot.slane %v43, 1
    %v80 = vrot.slane %v44, 1
    %v81 = vsel %vm53, %v79, %v80
    %v84 = vrot.slane %v43, 2
    %v85 = vrot.slane %v44, 2
    %v86 = vsel %vm59, %v84, %v85
    %v91 = vrot.slane %v45, 1
    %v92 = vrot.slane %v46, 1
    %v93 = vsel %vm53, %v91, %v92
    %v94 = vrot.slane %v45, 2
    %v95 = vrot.slane %v46, 2
    %v96 = vsel %vm59, %v94, %v95
    %v99 = vrot.slane %v47, 1
    %v100 = vrot.slane %v48, 1
    %v101 = vsel %vm53, %v99, %v100
    %v102 = vrot.slane %v47, 2
    %v103 = vrot.slane %v48, 2
    %v104 = vsel %vm59, %v102, %v103
    %v107 = vrot.slane %v49, 1
    %v108 = vrot.slane %v50, 1
    %v109 = vsel %vm53, %v107, %v108
    %v110 = vrot.slane %v49, 2
    %v111 = vrot.slane %v50, 2
    %v112 = vsel %vm59, %v110, %v111
    %v113 = vrot.slane %v93, 2
    %v114 = vrot.slane %v96, 2
    %v115 = vrot.slane %v101, 2
    %v116 = vrot.slane %v104, 2
    %v117 = vrot.slane %v109, 2
    %v118 = vrot.slane %v112, 2
    %v119 = vrot.slane %v92, 2
    %v120 = vsel %vm59, %v113, %v119
    %v121 = vrot.slane %v95, 2
    %v122 = vsel %vm59, %v114, %v121
    %v123 = vrot.slane %v100, 2
    %v124 = vsel %vm59, %v115, %v123
    %v125 = vrot.slane %v103, 2
    %v126 = vsel %vm59, %v116, %v125
    %v127 = vrot.slane %v108, 2
    %v128 = vsel %vm59, %v117, %v127
    %v129 = vrot.slane %v111, 2
    %v130 = vsel %vm59, %v118, %v129
    %v158 = vsel %vm59, %v40, %v94
    %v159 = vsel %vm59, %v55, %v113
    %v160 = vsel %vm59, %v61, %v114
    %v161 = vsel %vm59, %v42, %v102
    %v162 = vsel %vm59, %v68, %v115
    %v163 = vsel %vm59, %v73, %v116
    %v164 = vsel %vm59, %v44, %v110
    %v165 = vsel %vm59, %v80, %v117
    %v166 = vsel %vm59, %v85, %v118
    %v167 = vld [vmem:[#allocation4] sm:$0xff]
    %v168 = vld [vmem:[#allocation4 + $0x8] sm:$0xff]
    %v169 = vld [vmem:[#allocation4 + $0x10] sm:$0xff]
    %v170 = vld [vmem:[#allocation4 + $0x18] sm:$0xff]
    %v171 = vld [vmem:[#allocation4 + $0x20] sm:$0xff]
    %v172 = vld [vmem:[#allocation4 + $0x28] sm:$0xff]
    %v173 = vld [vmem:[#allocation4 + $0x30] sm:$0xff]
    %v174 = vld [vmem:[#allocation4 + $0x38] sm:$0xff]
    %v175 = vld [vmem:[#allocation4 + $0x40] sm:$0xff]
    %v176 = vld [vmem:[#allocation4 + $0x48] sm:$0xff]
    %v177 = vld [vmem:[#allocation4 + $0x50] sm:$0xff]
    %v178 = vld [vmem:[#allocation4 + $0x58] sm:$0xff]
    %v179 = vld [vmem:[#allocation4 + $0x60] sm:$0xff]
    %v180 = vld [vmem:[#allocation4 + $0x68] sm:$0xff]
    %v181 = vld [vmem:[#allocation4 + $0x70] sm:$0xff]
    %v182 = vld [vmem:[#allocation4 + $0x78] sm:$0xff]
    %v183 = vld [vmem:[#allocation4 + $0x80] sm:$0xff]
    %v184 = vld [vmem:[#allocation4 + $0x88] sm:$0xff]
    %v185 = vld [vmem:[#allocation4 + $0x90] sm:$0xff]
    %v186 = vld [vmem:[#allocation4 + $0x98] sm:$0xff]
    %v187 = vld [vmem:[#allocation4 + $0xa0] sm:$0xff]
    %v188 = vld [vmem:[#allocation4 + $0xa8] sm:$0xff]
    %v189 = vld [vmem:[#allocation4 + $0xb0] sm:$0xff]
    %v190 = vld [vmem:[#allocation4 + $0xb8] sm:$0xff]
    %v191 = vld [vmem:[#allocation4 + $0xc0] sm:$0xff]
    %v192 = vld [vmem:[#allocation4 + $0xc8] sm:$0xff]
    %v193 = vld [vmem:[#allocation4 + $0xd0] sm:$0xff]
    %v194 = vld [vmem:[#allocation4 + $0xd8] sm:$0xff]
    %v195 = vld [vmem:[#allocation4 + $0xe0] sm:$0xff]
    %v196 = vld [vmem:[#allocation4 + $0xe8] sm:$0xff]
    %v197 = vld [vmem:[#allocation4 + $0xf0] sm:$0xff]
    %v198 = vld [vmem:[#allocation4 + $0xf8] sm:$0xff]
    %v199 = vld [vmem:[#allocation4 + $0x100] sm:$0xff]
    %v200 = vld [vmem:[#allocation4 + $0x108] sm:$0xff]
    %v201 = vld [vmem:[#allocation4 + $0x110] sm:$0xff]
    %v202 = vld [vmem:[#allocation4 + $0x118] sm:$0xff]
    %v203 = vld [vmem:[#allocation4 + $0x120] sm:$0xff]
    %v204 = vld [vmem:[#allocation4 + $0x128] sm:$0xff]
    %v205 = vld [vmem:[#allocation4 + $0x130] sm:$0xff]
    %v206 = vld [vmem:[#allocation4 + $0x138] sm:$0xff]
    %v207 = vld [vmem:[#allocation4 + $0x140] sm:$0xff]
    %v208 = vld [vmem:[#allocation4 + $0x148] sm:$0xff]
    %v209 = vld [vmem:[#allocation4 + $0x150] sm:$0xff]
    %v210 = vld [vmem:[#allocation4 + $0x158] sm:$0xff]
    %v211 = vld [vmem:[#allocation4 + $0x160] sm:$0xff]
    %v212 = vld [vmem:[#allocation4 + $0x168] sm:$0xff]
    %v213 = vld [vmem:[#allocation4 + $0x170] sm:$0xff]
    %v214 = vld [vmem:[#allocation4 + $0x178] sm:$0xff]
    %v215 = vld [vmem:[#allocation4 + $0x180] sm:$0xff]
    %v216 = vld [vmem:[#allocation4 + $0x188] sm:$0xff]
    %v217 = vld [vmem:[#allocation4 + $0x190] sm:$0xff]
    %v218 = vld [vmem:[#allocation4 + $0x198] sm:$0xff]
    %v219 = vld [vmem:[#allocation4 + $0x1a0] sm:$0xff]
    %v220 = vld [vmem:[#allocation4 + $0x1a8] sm:$0xff]
    %v221 = vld [vmem:[#allocation4 + $0x1b0] sm:$0xff]
    %v222 = vld [vmem:[#allocation4 + $0x1b8] sm:$0xff]
    %v223 = vld [vmem:[#allocation4 + $0x1c0] sm:$0xff]
    %v224 = vld [vmem:[#allocation4 + $0x1c8] sm:$0xff]
    %v225 = vld [vmem:[#allocation4 + $0x1d0] sm:$0xff]
    %v226 = vld [vmem:[#allocation4 + $0x1d8] sm:$0xff]
    %v227 = vld [vmem:[#allocation4 + $0x1e0] sm:$0xff]
    %v228 = vld [vmem:[#allocation4 + $0x1e8] sm:$0xff]
    %v229 = vld [vmem:[#allocation4 + $0x1f0] sm:$0xff]
    %v230 = vld [vmem:[#allocation4 + $0x1f8] sm:$0xff]
    %v231 = vld [vmem:[#allocation4 + $0x200] sm:$0xff]
    %v232 = vld [vmem:[#allocation4 + $0x208] sm:$0xff]
    %v233 = vld [vmem:[#allocation4 + $0x210] sm:$0xff]
    %v234 = vld [vmem:[#allocation4 + $0x218] sm:$0xff]
    %v235 = vld [vmem:[#allocation4 + $0x220] sm:$0xff]
    %v236 = vld [vmem:[#allocation4 + $0x228] sm:$0xff]
    %v237 = vld [vmem:[#allocation4 + $0x230] sm:$0xff]
    %v238 = vld [vmem:[#allocation4 + $0x238] sm:$0xff]
    %v239 = vld [vmem:[#allocation4 + $0x240] sm:$0xff]
    %v240 = vld [vmem:[#allocation4 + $0x248] sm:$0xff]
    %v241 = vld [vmem:[#allocation4 + $0x250] sm:$0xff]
    %v242 = vld [vmem:[#allocation4 + $0x258] sm:$0xff]
    %v243 = vld [vmem:[#allocation4 + $0x260] sm:$0xff]
    %v244 = vld [vmem:[#allocation4 + $0x268] sm:$0xff]
    %v245 = vld [vmem:[#allocation4 + $0x270] sm:$0xff]
    %v246 = vld [vmem:[#allocation4 + $0x278] sm:$0xff]
    %v247 = vld [vmem:[#allocation4 + $0x280] sm:$0xff]
    %v248 = vld [vmem:[#allocation4 + $0x288] sm:$0xff]
    %v249 = vld [vmem:[#allocation4 + $0x290] sm:$0xff]
    %v250 = vld [vmem:[#allocation4 + $0x298] sm:$0xff]
    %v251 = vld [vmem:[#allocation4 + $0x2a0] sm:$0xff]
    %v252 = vld [vmem:[#allocation4 + $0x2a8] sm:$0xff]
    %v253 = vld [vmem:[#allocation4 + $0x2b0] sm:$0xff]
    %v254 = vld [vmem:[#allocation4 + $0x2b8] sm:$0xff]
    %v255 = vld [vmem:[#allocation4 + $0x2c0] sm:$0xff]
    %v256 = vld [vmem:[#allocation4 + $0x2c8] sm:$0xff]
    %v257 = vld [vmem:[#allocation4 + $0x2d0] sm:$0xff]
    %v258 = vld [vmem:[#allocation4 + $0x2d8] sm:$0xff]
    %v259 = vld [vmem:[#allocation4 + $0x2e0] sm:$0xff]
    %v260 = vld [vmem:[#allocation4 + $0x2e8] sm:$0xff]
    %v261 = vld [vmem:[#allocation4 + $0x2f0] sm:$0xff]
    %v262 = vld [vmem:[#allocation4 + $0x2f8] sm:$0xff]
    %v263 = vld [vmem:[#allocation4 + $0x300] sm:$0xff]
    %v264 = vld [vmem:[#allocation4 + $0x308] sm:$0xff]
    %v265 = vld [vmem:[#allocation4 + $0x310] sm:$0xff]
    %v266 = vld [vmem:[#allocation4 + $0x318] sm:$0xff]
    %v267 = vld [vmem:[#allocation4 + $0x320] sm:$0xff]
    %v268 = vld [vmem:[#allocation4 + $0x328] sm:$0xff]
    %v269 = vld [vmem:[#allocation4 + $0x330] sm:$0xff]
    %v270 = vld [vmem:[#allocation4 + $0x338] sm:$0xff]
    %v271 = vld [vmem:[#allocation4 + $0x340] sm:$0xff]
    %v272 = vld [vmem:[#allocation4 + $0x348] sm:$0xff]
    %v273 = vld [vmem:[#allocation4 + $0x350] sm:$0xff]
    %v274 = vld [vmem:[#allocation4 + $0x358] sm:$0xff]
    %v275 = vld [vmem:[#allocation4 + $0x360] sm:$0xff]
    %v276 = vld [vmem:[#allocation4 + $0x368] sm:$0xff]
    %v277 = vld [vmem:[#allocation4 + $0x370] sm:$0xff]
    %v278 = vld [vmem:[#allocation4 + $0x378] sm:$0xff]
    %v279 = vld [vmem:[#allocation4 + $0x380] sm:$0xff]
    %v280 = vld [vmem:[#allocation4 + $0x388] sm:$0xff]
    %v281 = vld [vmem:[#allocation4 + $0x390] sm:$0xff]
    %v282 = vld [vmem:[#allocation4 + $0x398] sm:$0xff]
    %v283 = vld [vmem:[#allocation4 + $0x3a0] sm:$0xff]
    %v284 = vld [vmem:[#allocation4 + $0x3a8] sm:$0xff]
    %v285 = vld [vmem:[#allocation4 + $0x3b0] sm:$0xff]
    %v286 = vld [vmem:[#allocation4 + $0x3b8] sm:$0xff]
    %v287 = vld [vmem:[#allocation4 + $0x3c0] sm:$0xff]
    %v288 = vld [vmem:[#allocation4 + $0x3c8] sm:$0xff]
    %v289 = vld [vmem:[#allocation4 + $0x3d0] sm:$0xff]
    %v290 = vld [vmem:[#allocation4 + $0x3d8] sm:$0xff]
    %v291 = vld [vmem:[#allocation4 + $0x3e0] sm:$0xff]
    %v292 = vld [vmem:[#allocation4 + $0x3e8] sm:$0xff]
    %v293 = vld [vmem:[#allocation4 + $0x3f0] sm:$0xff]
    %v294 = vld [vmem:[#allocation4 + $0x3f8] sm:$0xff]
    %v295 = vld [vmem:[#allocation4 + $0x400] sm:$0xff]
    %v296 = vld [vmem:[#allocation4 + $0x408] sm:$0xff]
    %v297 = vld [vmem:[#allocation4 + $0x410] sm:$0xff]
    %v298 = vld [vmem:[#allocation4 + $0x418] sm:$0xff]
    %v299 = vld [vmem:[#allocation4 + $0x420] sm:$0xff]
    %v300 = vld [vmem:[#allocation4 + $0x428] sm:$0xff]
    %v301 = vld [vmem:[#allocation4 + $0x430] sm:$0xff]
    %v302 = vld [vmem:[#allocation4 + $0x438] sm:$0xff]
    %v303 = vld [vmem:[#allocation4 + $0x440] sm:$0xff]
    %v304 = vld [vmem:[#allocation4 + $0x448] sm:$0xff]
    %v305 = vld [vmem:[#allocation4 + $0x450] sm:$0xff]
    %v306 = vld [vmem:[#allocation4 + $0x458] sm:$0xff]
    %v307 = vld [vmem:[#allocation4 + $0x460] sm:$0xff]
    %v308 = vld [vmem:[#allocation4 + $0x468] sm:$0xff]
    %v309 = vld [vmem:[#allocation4 + $0x470] sm:$0xff]
    %v310 = vld [vmem:[#allocation4 + $0x478] sm:$0xff]
    %v311 = vld [vmem:[#allocation4 + $0x480] sm:$0xff]
    %v312 = vld [vmem:[#allocation4 + $0x488] sm:$0xff]
    %v313 = vld [vmem:[#allocation4 + $0x490] sm:$0xff]
    %v314 = vld [vmem:[#allocation4 + $0x498] sm:$0xff]
    %v315 = vld [vmem:[#allocation4 + $0x4a0] sm:$0xff]
    %v316 = vld [vmem:[#allocation4 + $0x4a8] sm:$0xff]
    %v317 = vld [vmem:[#allocation4 + $0x4b0] sm:$0xff]
    %v318 = vld [vmem:[#allocation4 + $0x4b8] sm:$0xff]
    %v319 = vld [vmem:[#allocation4 + $0x4c0] sm:$0xff]
    %v320 = vld [vmem:[#allocation4 + $0x4c8] sm:$0xff]
    %v321 = vld [vmem:[#allocation4 + $0x4d0] sm:$0xff]
    %v322 = vld [vmem:[#allocation4 + $0x4d8] sm:$0xff]
    %v323 = vld [vmem:[#allocation4 + $0x4e0] sm:$0xff]
    %v324 = vld [vmem:[#allocation4 + $0x4e8] sm:$0xff]
    %v325 = vld [vmem:[#allocation4 + $0x4f0] sm:$0xff]
    %v326 = vld [vmem:[#allocation4 + $0x4f8] sm:$0xff]
    %v327 = vld [vmem:[#allocation4 + $0x500] sm:$0xff]
    %v328 = vld [vmem:[#allocation4 + $0x508] sm:$0xff]
    %v329 = vld [vmem:[#allocation4 + $0x510] sm:$0xff]
    %v330 = vld [vmem:[#allocation4 + $0x518] sm:$0xff]
    %v331 = vld [vmem:[#allocation4 + $0x520] sm:$0xff]
    %v332 = vld [vmem:[#allocation4 + $0x528] sm:$0xff]
    %v333 = vld [vmem:[#allocation4 + $0x530] sm:$0xff]
    %v334 = vld [vmem:[#allocation4 + $0x538] sm:$0xff]
    %v335 = vld [vmem:[#allocation4 + $0x540] sm:$0xff]
    %v336 = vld [vmem:[#allocation4 + $0x548] sm:$0xff]
    %v337 = vld [vmem:[#allocation4 + $0x550] sm:$0xff]
    %v338 = vld [vmem:[#allocation4 + $0x558] sm:$0xff]
    %v339 = vld [vmem:[#allocation4 + $0x560] sm:$0xff]
    %v340 = vld [vmem:[#allocation4 + $0x568] sm:$0xff]
    %v341 = vld [vmem:[#allocation4 + $0x570] sm:$0xff]
    %v342 = vld [vmem:[#allocation4 + $0x578] sm:$0xff]
    %v343 = vld [vmem:[#allocation4 + $0x580] sm:$0xff]
    %v344 = vld [vmem:[#allocation4 + $0x588] sm:$0xff]
    %v345 = vld [vmem:[#allocation4 + $0x590] sm:$0xff]
    %v346 = vld [vmem:[#allocation4 + $0x598] sm:$0xff]
    %v347 = vld [vmem:[#allocation4 + $0x5a0] sm:$0xff]
    %v348 = vld [vmem:[#allocation4 + $0x5a8] sm:$0xff]
    %v349 = vld [vmem:[#allocation4 + $0x5b0] sm:$0xff]
    %v350 = vld [vmem:[#allocation4 + $0x5b8] sm:$0xff]
    %v351 = vld [vmem:[#allocation4 + $0x5c0] sm:$0xff]
    %v352 = vld [vmem:[#allocation4 + $0x5c8] sm:$0xff]
    %v353 = vld [vmem:[#allocation4 + $0x5d0] sm:$0xff]
    %v354 = vld [vmem:[#allocation4 + $0x5d8] sm:$0xff]
    %v355 = vld [vmem:[#allocation4 + $0x5e0] sm:$0xff]
    %v356 = vld [vmem:[#allocation4 + $0x5e8] sm:$0xff]
    %v357 = vld [vmem:[#allocation4 + $0x5f0] sm:$0xff]
    %v358 = vld [vmem:[#allocation4 + $0x5f8] sm:$0xff]
    %v359 = vld [vmem:[#allocation4 + $0x600] sm:$0xff]
    %v360 = vld [vmem:[#allocation4 + $0x608] sm:$0xff]
    %v361 = vld [vmem:[#allocation4 + $0x610] sm:$0xff]
    %v362 = vld [vmem:[#allocation4 + $0x618] sm:$0xff]
    %v363 = vld [vmem:[#allocation4 + $0x620] sm:$0xff]
    %v364 = vld [vmem:[#allocation4 + $0x628] sm:$0xff]
    %v365 = vld [vmem:[#allocation4 + $0x630] sm:$0xff]
    %v366 = vld [vmem:[#allocation4 + $0x638] sm:$0xff]
    %v367 = vld [vmem:[#allocation4 + $0x640] sm:$0xff]
    %v368 = vld [vmem:[#allocation4 + $0x648] sm:$0xff]
    %v369 = vld [vmem:[#allocation4 + $0x650] sm:$0xff]
    %v370 = vld [vmem:[#allocation4 + $0x658] sm:$0xff]
    %v371 = vld [vmem:[#allocation4 + $0x660] sm:$0xff]
    %v372 = vld [vmem:[#allocation4 + $0x668] sm:$0xff]
    %v373 = vld [vmem:[#allocation4 + $0x670] sm:$0xff]
    %v374 = vld [vmem:[#allocation4 + $0x678] sm:$0xff]
    %v375 = vld [vmem:[#allocation4 + $0x680] sm:$0xff]
    %v376 = vld [vmem:[#allocation4 + $0x688] sm:$0xff]
    %v377 = vld [vmem:[#allocation4 + $0x690] sm:$0xff]
    %v378 = vld [vmem:[#allocation4 + $0x698] sm:$0xff]
    %v379 = vld [vmem:[#allocation4 + $0x6a0] sm:$0xff]
    %v380 = vld [vmem:[#allocation4 + $0x6a8] sm:$0xff]
    %v381 = vld [vmem:[#allocation4 + $0x6b0] sm:$0xff]
    %v382 = vld [vmem:[#allocation4 + $0x6b8] sm:$0xff]
    %v383 = vld [vmem:[#allocation4 + $0x6c0] sm:$0xff]
    %v384 = vld [vmem:[#allocation4 + $0x6c8] sm:$0xff]
    %v385 = vld [vmem:[#allocation4 + $0x6d0] sm:$0xff]
    %v386 = vld [vmem:[#allocation4 + $0x6d8] sm:$0xff]
    %v387 = vld [vmem:[#allocation4 + $0x6e0] sm:$0xff]
    %v388 = vld [vmem:[#allocation4 + $0x6e8] sm:$0xff]
    %v389 = vld [vmem:[#allocation4 + $0x6f0] sm:$0xff]
    %v390 = vld [vmem:[#allocation4 + $0x6f8] sm:$0xff]
    %v391 = vld [vmem:[#allocation4 + $0x700] sm:$0xff]
    %v392 = vld [vmem:[#allocation4 + $0x708] sm:$0xff]
    %v393 = vld [vmem:[#allocation4 + $0x710] sm:$0xff]
    %v394 = vld [vmem:[#allocation4 + $0x718] sm:$0xff]
    %v395 = vld [vmem:[#allocation4 + $0x720] sm:$0xff]
    %v396 = vld [vmem:[#allocation4 + $0x728] sm:$0xff]
    %v397 = vld [vmem:[#allocation4 + $0x730] sm:$0xff]
    %v398 = vld [vmem:[#allocation4 + $0x738] sm:$0xff]
    %v399 = vld [vmem:[#allocation4 + $0x740] sm:$0xff]
    %v400 = vld [vmem:[#allocation4 + $0x748] sm:$0xff]
    %v401 = vld [vmem:[#allocation4 + $0x750] sm:$0xff]
    %v402 = vld [vmem:[#allocation4 + $0x758] sm:$0xff]
    %v403 = vld [vmem:[#allocation4 + $0x760] sm:$0xff]
    %v404 = vld [vmem:[#allocation4 + $0x768] sm:$0xff]
    %v405 = vld [vmem:[#allocation4 + $0x770] sm:$0xff]
    %v406 = vld [vmem:[#allocation4 + $0x778] sm:$0xff]
    %v407 = vld [vmem:[#allocation4 + $0x780] sm:$0xff]
    %v408 = vld [vmem:[#allocation4 + $0x788] sm:$0xff]
    %v409 = vld [vmem:[#allocation4 + $0x790] sm:$0xff]
    %v410 = vld [vmem:[#allocation4 + $0x798] sm:$0xff]
    %v411 = vld [vmem:[#allocation4 + $0x7a0] sm:$0xff]
    %v412 = vld [vmem:[#allocation4 + $0x7a8] sm:$0xff]
    %v413 = vld [vmem:[#allocation4 + $0x7b0] sm:$0xff]
    %v414 = vld [vmem:[#allocation4 + $0x7b8] sm:$0xff]
    %v415 = vld [vmem:[#allocation4 + $0x7c0] sm:$0xff]
    %v416 = vld [vmem:[#allocation4 + $0x7c8] sm:$0xff]
    %v417 = vld [vmem:[#allocation4 + $0x7d0] sm:$0xff]
    %v418 = vld [vmem:[#allocation4 + $0x7d8] sm:$0xff]
    %v419 = vld [vmem:[#allocation4 + $0x7e0] sm:$0xff]
    %v420 = vld [vmem:[#allocation4 + $0x7e8] sm:$0xff]
    %v421 = vld [vmem:[#allocation4 + $0x7f0] sm:$0xff]
    %v422 = vld [vmem:[#allocation4 + $0x7f8] sm:$0xff]
    %v423 = vld [vmem:[#allocation4 + $0x800] sm:$0xff]
    %v424 = vld [vmem:[#allocation4 + $0x808] sm:$0xff]
    %v425 = vld [vmem:[#allocation4 + $0x810] sm:$0xff]
    %v426 = vld [vmem:[#allocation4 + $0x818] sm:$0xff]
    %v427 = vld [vmem:[#allocation4 + $0x820] sm:$0xff]
    %v428 = vld [vmem:[#allocation4 + $0x828] sm:$0xff]
    %v429 = vld [vmem:[#allocation4 + $0x830] sm:$0xff]
    %v430 = vld [vmem:[#allocation4 + $0x838] sm:$0xff]
    %v431 = vld [vmem:[#allocation4 + $0x840] sm:$0xff]
    %v432 = vld [vmem:[#allocation4 + $0x848] sm:$0xff]
    %v433 = vld [vmem:[#allocation4 + $0x850] sm:$0xff]
    %v434 = vld [vmem:[#allocation4 + $0x858] sm:$0xff]
    %v435 = vld [vmem:[#allocation4 + $0x860] sm:$0xff]
    %v436 = vld [vmem:[#allocation4 + $0x868] sm:$0xff]
    %v437 = vld [vmem:[#allocation4 + $0x870] sm:$0xff]
    %v438 = vld [vmem:[#allocation4 + $0x878] sm:$0xff]
    %v439 = vld [vmem:[#allocation4 + $0x880] sm:$0xff]
    %v440 = vld [vmem:[#allocation4 + $0x888] sm:$0xff]
    %v441 = vld [vmem:[#allocation4 + $0x890] sm:$0xff]
    %v442 = vld [vmem:[#allocation4 + $0x898] sm:$0xff]
    %v443 = vld [vmem:[#allocation4 + $0x8a0] sm:$0xff]
    %v444 = vld [vmem:[#allocation4 + $0x8a8] sm:$0xff]
    %v445 = vld [vmem:[#allocation4 + $0x8b0] sm:$0xff]
    %v446 = vld [vmem:[#allocation4 + $0x8b8] sm:$0xff]
    %v447 = vld [vmem:[#allocation4 + $0x8c0] sm:$0xff]
    %v448 = vld [vmem:[#allocation4 + $0x8c8] sm:$0xff]
    %v449 = vld [vmem:[#allocation4 + $0x8d0] sm:$0xff]
    %v450 = vld [vmem:[#allocation4 + $0x8d8] sm:$0xff]
    %v451 = vld [vmem:[#allocation4 + $0x8e0] sm:$0xff]
    %v452 = vld [vmem:[#allocation4 + $0x8e8] sm:$0xff]
    %v453 = vld [vmem:[#allocation4 + $0x8f0] sm:$0xff]
    %v454 = vld [vmem:[#allocation4 + $0x8f8] sm:$0xff]
    %v455 = vld [vmem:[#allocation4 + $0x900] sm:$0xff]
    %v456 = vld [vmem:[#allocation4 + $0x908] sm:$0xff]
    %v457 = vld [vmem:[#allocation4 + $0x910] sm:$0xff]
    %v458 = vld [vmem:[#allocation4 + $0x918] sm:$0xff]
    %v459 = vld [vmem:[#allocation4 + $0x920] sm:$0xff]
    %v460 = vld [vmem:[#allocation4 + $0x928] sm:$0xff]
    %v461 = vld [vmem:[#allocation4 + $0x930] sm:$0xff]
    %v462 = vld [vmem:[#allocation4 + $0x938] sm:$0xff]
    %v463 = vld [vmem:[#allocation4 + $0x940] sm:$0xff]
    %v464 = vld [vmem:[#allocation4 + $0x948] sm:$0xff]
    %v465 = vld [vmem:[#allocation4 + $0x950] sm:$0xff]
    %v466 = vld [vmem:[#allocation4 + $0x958] sm:$0xff]
    %v467 = vld [vmem:[#allocation4 + $0x960] sm:$0xff]
    %v468 = vld [vmem:[#allocation4 + $0x968] sm:$0xff]
    %v469 = vld [vmem:[#allocation4 + $0x970] sm:$0xff]
    %v470 = vld [vmem:[#allocation4 + $0x978] sm:$0xff]
    %v471 = vld [vmem:[#allocation4 + $0x980] sm:$0xff]
    %v472 = vld [vmem:[#allocation4 + $0x988] sm:$0xff]
    %v473 = vld [vmem:[#allocation4 + $0x990] sm:$0xff]
    %v474 = vld [vmem:[#allocation4 + $0x998] sm:$0xff]
    %v475 = vld [vmem:[#allocation4 + $0x9a0] sm:$0xff]
    %v476 = vld [vmem:[#allocation4 + $0x9a8] sm:$0xff]
    %v477 = vld [vmem:[#allocation4 + $0x9b0] sm:$0xff]
    %v478 = vld [vmem:[#allocation4 + $0x9b8] sm:$0xff]
    %v479 = vld [vmem:[#allocation4 + $0x9c0] sm:$0xff]
    %v480 = vld [vmem:[#allocation4 + $0x9c8] sm:$0xff]
    %v481 = vld [vmem:[#allocation4 + $0x9d0] sm:$0xff]
    %v482 = vld [vmem:[#allocation4 + $0x9d8] sm:$0xff]
    %v483 = vld [vmem:[#allocation4 + $0x9e0] sm:$0xff]
    %v484 = vld [vmem:[#allocation4 + $0x9e8] sm:$0xff]
    %v485 = vld [vmem:[#allocation4 + $0x9f0] sm:$0xff]
    %v486 = vld [vmem:[#allocation4 + $0x9f8] sm:$0xff]
    %v487 = vld [vmem:[#allocation4 + $0xa00] sm:$0xff]
    %v488 = vld [vmem:[#allocation4 + $0xa08] sm:$0xff]
    %v489 = vld [vmem:[#allocation4 + $0xa10] sm:$0xff]
    %v490 = vld [vmem:[#allocation4 + $0xa18] sm:$0xff]
    %v491 = vld [vmem:[#allocation4 + $0xa20] sm:$0xff]
    %v492 = vld [vmem:[#allocation4 + $0xa28] sm:$0xff]
    %v493 = vld [vmem:[#allocation4 + $0xa30] sm:$0xff]
    %v494 = vld [vmem:[#allocation4 + $0xa38] sm:$0xff]
    %v495 = vld [vmem:[#allocation4 + $0xa40] sm:$0xff]
    %v496 = vld [vmem:[#allocation4 + $0xa48] sm:$0xff]
    %v497 = vld [vmem:[#allocation4 + $0xa50] sm:$0xff]
    %v498 = vld [vmem:[#allocation4 + $0xa58] sm:$0xff]
    %v499 = vld [vmem:[#allocation4 + $0xa60] sm:$0xff]
    %v500 = vld [vmem:[#allocation4 + $0xa68] sm:$0xff]
    %v501 = vld [vmem:[#allocation4 + $0xa70] sm:$0xff]
    %v502 = vld [vmem:[#allocation4 + $0xa78] sm:$0xff]
    %v503 = vld [vmem:[#allocation4 + $0xa80] sm:$0xff]
    %v504 = vld [vmem:[#allocation4 + $0xa88] sm:$0xff]
    %v505 = vld [vmem:[#allocation4 + $0xa90] sm:$0xff]
    %v506 = vld [vmem:[#allocation4 + $0xa98] sm:$0xff]
    %v507 = vld [vmem:[#allocation4 + $0xaa0] sm:$0xff]
    %v508 = vld [vmem:[#allocation4 + $0xaa8] sm:$0xff]
    %v509 = vld [vmem:[#allocation4 + $0xab0] sm:$0xff]
    %v510 = vld [vmem:[#allocation4 + $0xab8] sm:$0xff]
    %v511 = vld [vmem:[#allocation4 + $0xac0] sm:$0xff]
    %v512 = vld [vmem:[#allocation4 + $0xac8] sm:$0xff]
    %v513 = vld [vmem:[#allocation4 + $0xad0] sm:$0xff]
    %v514 = vld [vmem:[#allocation4 + $0xad8] sm:$0xff]
    %v515 = vld [vmem:[#allocation4 + $0xae0] sm:$0xff]
    %v516 = vld [vmem:[#allocation4 + $0xae8] sm:$0xff]
    %v517 = vld [vmem:[#allocation4 + $0xaf0] sm:$0xff]
    %v518 = vld [vmem:[#allocation4 + $0xaf8] sm:$0xff]
    %v519 = vld [vmem:[#allocation4 + $0xb00] sm:$0xff]
    %v520 = vld [vmem:[#allocation4 + $0xb08] sm:$0xff]
    %v521 = vld [vmem:[#allocation4 + $0xb10] sm:$0xff]
    %v522 = vld [vmem:[#allocation4 + $0xb18] sm:$0xff]
    %v523 = vld [vmem:[#allocation4 + $0xb20] sm:$0xff]
    %v524 = vld [vmem:[#allocation4 + $0xb28] sm:$0xff]
    %v525 = vld [vmem:[#allocation4 + $0xb30] sm:$0xff]
    %v526 = vld [vmem:[#allocation4 + $0xb38] sm:$0xff]
    %v527 = vld [vmem:[#allocation4 + $0xb40] sm:$0xff]
    %v528 = vld [vmem:[#allocation4 + $0xb48] sm:$0xff]
    %v529 = vld [vmem:[#allocation4 + $0xb50] sm:$0xff]
    %v530 = vld [vmem:[#allocation4 + $0xb58] sm:$0xff]
    %v531 = vld [vmem:[#allocation4 + $0xb60] sm:$0xff]
    %v532 = vld [vmem:[#allocation4 + $0xb68] sm:$0xff]
    %v533 = vld [vmem:[#allocation4 + $0xb70] sm:$0xff]
    %v534 = vld [vmem:[#allocation4 + $0xb78] sm:$0xff]
    %v535 = vld [vmem:[#allocation4 + $0xb80] sm:$0xff]
    %v536 = vld [vmem:[#allocation4 + $0xb88] sm:$0xff]
    %v537 = vld [vmem:[#allocation4 + $0xb90] sm:$0xff]
    %v538 = vld [vmem:[#allocation4 + $0xb98] sm:$0xff]
    %v539 = vld [vmem:[#allocation4 + $0xba0] sm:$0xff]
    %v540 = vld [vmem:[#allocation4 + $0xba8] sm:$0xff]
    %v541 = vld [vmem:[#allocation4 + $0xbb0] sm:$0xff]
    %v542 = vld [vmem:[#allocation4 + $0xbb8] sm:$0xff]
    %v543 = vld [vmem:[#allocation4 + $0xbc0] sm:$0xff]
    %v544 = vld [vmem:[#allocation4 + $0xbc8] sm:$0xff]
    %v545 = vld [vmem:[#allocation4 + $0xbd0] sm:$0xff]
    %v546 = vld [vmem:[#allocation4 + $0xbd8] sm:$0xff]
    %v547 = vld [vmem:[#allocation4 + $0xbe0] sm:$0xff]
    %v548 = vld [vmem:[#allocation4 + $0xbe8] sm:$0xff]
    %v549 = vld [vmem:[#allocation4 + $0xbf0] sm:$0xff]
    %v550 = vld [vmem:[#allocation4 + $0xbf8] sm:$0xff]
    %v551 = vld [vmem:[#allocation4 + $0xc00] sm:$0xff]
    %v552 = vld [vmem:[#allocation4 + $0xc08] sm:$0xff]
    %v553 = vld [vmem:[#allocation4 + $0xc10] sm:$0xff]
    %v554 = vld [vmem:[#allocation4 + $0xc18] sm:$0xff]
    %v555 = vld [vmem:[#allocation4 + $0xc20] sm:$0xff]
    %v556 = vld [vmem:[#allocation4 + $0xc28] sm:$0xff]
    %v557 = vld [vmem:[#allocation4 + $0xc30] sm:$0xff]
    %v558 = vld [vmem:[#allocation4 + $0xc38] sm:$0xff]
    %v559 = vld [vmem:[#allocation4 + $0xc40] sm:$0xff]
    %v560 = vld [vmem:[#allocation4 + $0xc48] sm:$0xff]
    %v561 = vld [vmem:[#allocation4 + $0xc50] sm:$0xff]
    %v562 = vld [vmem:[#allocation4 + $0xc58] sm:$0xff]
    %v563 = vld [vmem:[#allocation4 + $0xc60] sm:$0xff]
    %v564 = vld [vmem:[#allocation4 + $0xc68] sm:$0xff]
    %v565 = vld [vmem:[#allocation4 + $0xc70] sm:$0xff]
    %v566 = vld [vmem:[#allocation4 + $0xc78] sm:$0xff]
    %v567 = vld [vmem:[#allocation4 + $0xc80] sm:$0xff]
    %v568 = vld [vmem:[#allocation4 + $0xc88] sm:$0xff]
    %v569 = vld [vmem:[#allocation4 + $0xc90] sm:$0xff]
    %v570 = vld [vmem:[#allocation4 + $0xc98] sm:$0xff]
    %v571 = vld [vmem:[#allocation4 + $0xca0] sm:$0xff]
    %v572 = vld [vmem:[#allocation4 + $0xca8] sm:$0xff]
    %v573 = vld [vmem:[#allocation4 + $0xcb0] sm:$0xff]
    %v574 = vld [vmem:[#allocation4 + $0xcb8] sm:$0xff]
    %v575 = vld [vmem:[#allocation4 + $0xcc0] sm:$0xff]
    %v576 = vld [vmem:[#allocation4 + $0xcc8] sm:$0xff]
    %v577 = vld [vmem:[#allocation4 + $0xcd0] sm:$0xff]
    %v578 = vld [vmem:[#allocation4 + $0xcd8] sm:$0xff]
    %v579 = vld [vmem:[#allocation4 + $0xce0] sm:$0xff]
    %v580 = vld [vmem:[#allocation4 + $0xce8] sm:$0xff]
    %v581 = vld [vmem:[#allocation4 + $0xcf0] sm:$0xff]
    %v582 = vld [vmem:[#allocation4 + $0xcf8] sm:$0xff]
    %v583 = vld [vmem:[#allocation4 + $0xd00] sm:$0xff]
    %v584 = vld [vmem:[#allocation4 + $0xd08] sm:$0xff]
    %v585 = vld [vmem:[#allocation4 + $0xd10] sm:$0xff]
    %v586 = vld [vmem:[#allocation4 + $0xd18] sm:$0xff]
    %v587 = vld [vmem:[#allocation4 + $0xd20] sm:$0xff]
    %v588 = vld [vmem:[#allocation4 + $0xd28] sm:$0xff]
    %v589 = vld [vmem:[#allocation4 + $0xd30] sm:$0xff]
    %v590 = vld [vmem:[#allocation4 + $0xd38] sm:$0xff]
    %v591 = vld [vmem:[#allocation4 + $0xd40] sm:$0xff]
    %v592 = vld [vmem:[#allocation4 + $0xd48] sm:$0xff]
    %v593 = vld [vmem:[#allocation4 + $0xd50] sm:$0xff]
    %v594 = vld [vmem:[#allocation4 + $0xd58] sm:$0xff]
    %v595 = vld [vmem:[#allocation4 + $0xd60] sm:$0xff]
    %v596 = vld [vmem:[#allocation4 + $0xd68] sm:$0xff]
    %v597 = vld [vmem:[#allocation4 + $0xd70] sm:$0xff]
    %v598 = vld [vmem:[#allocation4 + $0xd78] sm:$0xff]
    %v599 = vld [vmem:[#allocation4 + $0xd80] sm:$0xff]
    %v600 = vld [vmem:[#allocation4 + $0xd88] sm:$0xff]
    %v601 = vld [vmem:[#allocation4 + $0xd90] sm:$0xff]
    %v602 = vld [vmem:[#allocation4 + $0xd98] sm:$0xff]
    %v603 = vld [vmem:[#allocation4 + $0xda0] sm:$0xff]
    %v604 = vld [vmem:[#allocation4 + $0xda8] sm:$0xff]
    %v605 = vld [vmem:[#allocation4 + $0xdb0] sm:$0xff]
    %v606 = vld [vmem:[#allocation4 + $0xdb8] sm:$0xff]
    %v607 = vld [vmem:[#allocation4 + $0xdc0] sm:$0xff]
    %v608 = vld [vmem:[#allocation4 + $0xdc8] sm:$0xff]
    %v609 = vld [vmem:[#allocation4 + $0xdd0] sm:$0xff]
    %v610 = vld [vmem:[#allocation4 + $0xdd8] sm:$0xff]
    %v611 = vld [vmem:[#allocation4 + $0xde0] sm:$0xff]
    %v612 = vld [vmem:[#allocation4 + $0xde8] sm:$0xff]
    %v613 = vld [vmem:[#allocation4 + $0xdf0] sm:$0xff]
    %v614 = vld [vmem:[#allocation4 + $0xdf8] sm:$0xff]
    %v615 = vld [vmem:[#allocation4 + $0xe00] sm:$0xff]
    %v616 = vld [vmem:[#allocation4 + $0xe08] sm:$0xff]
    %v617 = vld [vmem:[#allocation4 + $0xe10] sm:$0xff]
    %v618 = vld [vmem:[#allocation4 + $0xe18] sm:$0xff]
    %v619 = vld [vmem:[#allocation4 + $0xe20] sm:$0xff]
    %v620 = vld [vmem:[#allocation4 + $0xe28] sm:$0xff]
    %v621 = vld [vmem:[#allocation4 + $0xe30] sm:$0xff]
    %v622 = vld [vmem:[#allocation4 + $0xe38] sm:$0xff]
    %v623 = vld [vmem:[#allocation4 + $0xe40] sm:$0xff]
    %v624 = vld [vmem:[#allocation4 + $0xe48] sm:$0xff]
    %v625 = vld [vmem:[#allocation4 + $0xe50] sm:$0xff]
    %v626 = vld [vmem:[#allocation4 + $0xe58] sm:$0xff]
    %v627 = vld [vmem:[#allocation4 + $0xe60] sm:$0xff]
    %v628 = vld [vmem:[#allocation4 + $0xe68] sm:$0xff]
    %v629 = vld [vmem:[#allocation4 + $0xe70] sm:$0xff]
    %v630 = vld [vmem:[#allocation4 + $0xe78] sm:$0xff]
    %v631 = vld [vmem:[#allocation4 + $0xe80] sm:$0xff]
    %v632 = vld [vmem:[#allocation4 + $0xe88] sm:$0xff]
    %v633 = vld [vmem:[#allocation4 + $0xe90] sm:$0xff]
    %v634 = vld [vmem:[#allocation4 + $0xe98] sm:$0xff]
    %v635 = vld [vmem:[#allocation4 + $0xea0] sm:$0xff]
    %v636 = vld [vmem:[#allocation4 + $0xea8] sm:$0xff]
    %v637 = vld [vmem:[#allocation4 + $0xeb0] sm:$0xff]
    %v638 = vld [vmem:[#allocation4 + $0xeb8] sm:$0xff]
    %v639 = vld [vmem:[#allocation4 + $0xec0] sm:$0xff]
    %v640 = vld [vmem:[#allocation4 + $0xec8] sm:$0xff]
    %v641 = vld [vmem:[#allocation4 + $0xed0] sm:$0xff]
    %v642 = vld [vmem:[#allocation4 + $0xed8] sm:$0xff]
    %v643 = vld [vmem:[#allocation4 + $0xee0] sm:$0xff]
    %v644 = vld [vmem:[#allocation4 + $0xee8] sm:$0xff]
    %v645 = vld [vmem:[#allocation4 + $0xef0] sm:$0xff]
    %v646 = vld [vmem:[#allocation4 + $0xef8] sm:$0xff]
    %v647 = vld [vmem:[#allocation4 + $0xf00] sm:$0xff]
    %v648 = vld [vmem:[#allocation4 + $0xf08] sm:$0xff]
    %v649 = vld [vmem:[#allocation4 + $0xf10] sm:$0xff]
    %v650 = vld [vmem:[#allocation4 + $0xf18] sm:$0xff]
    %v651 = vld [vmem:[#allocation4 + $0xf20] sm:$0xff]
    %v652 = vld [vmem:[#allocation4 + $0xf28] sm:$0xff]
    %v653 = vld [vmem:[#allocation4 + $0xf30] sm:$0xff]
    %v654 = vld [vmem:[#allocation4 + $0xf38] sm:$0xff]
    %v655 = vld [vmem:[#allocation4 + $0xf40] sm:$0xff]
    %v656 = vld [vmem:[#allocation4 + $0xf48] sm:$0xff]
    %v657 = vld [vmem:[#allocation4 + $0xf50] sm:$0xff]
    %v658 = vld [vmem:[#allocation4 + $0xf58] sm:$0xff]
    %v659 = vld [vmem:[#allocation4 + $0xf60] sm:$0xff]
    %v660 = vld [vmem:[#allocation4 + $0xf68] sm:$0xff]
    %v661 = vld [vmem:[#allocation4 + $0xf70] sm:$0xff]
    %v662 = vld [vmem:[#allocation4 + $0xf78] sm:$0xff]
    %v663 = vld [vmem:[#allocation4 + $0xf80] sm:$0xff]
    %v664 = vld [vmem:[#allocation4 + $0xf88] sm:$0xff]
    %v665 = vld [vmem:[#allocation4 + $0xf90] sm:$0xff]
    %v666 = vld [vmem:[#allocation4 + $0xf98] sm:$0xff]
    %v667 = vld [vmem:[#allocation4 + $0xfa0] sm:$0xff]
    %v668 = vld [vmem:[#allocation4 + $0xfa8] sm:$0xff]
    %v669 = vld [vmem:[#allocation4 + $0xfb0] sm:$0xff]
    %v670 = vld [vmem:[#allocation4 + $0xfb8] sm:$0xff]
    %v671 = vld [vmem:[#allocation4 + $0xfc0] sm:$0xff]
    %v672 = vld [vmem:[#allocation4 + $0xfc8] sm:$0xff]
    %v673 = vld [vmem:[#allocation4 + $0xfd0] sm:$0xff]
    %v674 = vld [vmem:[#allocation4 + $0xfd8] sm:$0xff]
    %v675 = vld [vmem:[#allocation4 + $0xfe0] sm:$0xff]
    %v676 = vld [vmem:[#allocation4 + $0xfe8] sm:$0xff]
    %v677 = vld [vmem:[#allocation4 + $0xff0] sm:$0xff]
    %v678 = vld [vmem:[#allocation4 + $0xff8] sm:$0xff]
    %v679 = vld [vmem:[#allocation4 + $0x1000] sm:$0xff]
    %v680 = vld [vmem:[#allocation4 + $0x1008] sm:$0xff]
    %v681 = vld [vmem:[#allocation4 + $0x1010] sm:$0xff]
    %v682 = vld [vmem:[#allocation4 + $0x1018] sm:$0xff]
    %v683 = vld [vmem:[#allocation4 + $0x1020] sm:$0xff]
    %v684 = vld [vmem:[#allocation4 + $0x1028] sm:$0xff]
    %v685 = vld [vmem:[#allocation4 + $0x1030] sm:$0xff]
    %v686 = vld [vmem:[#allocation4 + $0x1038] sm:$0xff]
    %v687 = vld [vmem:[#allocation4 + $0x1040] sm:$0xff]
    %v688 = vld [vmem:[#allocation4 + $0x1048] sm:$0xff]
    %v689 = vld [vmem:[#allocation4 + $0x1050] sm:$0xff]
    %v690 = vld [vmem:[#allocation4 + $0x1058] sm:$0xff]
    %v691 = vld [vmem:[#allocation4 + $0x1060] sm:$0xff]
    %v692 = vld [vmem:[#allocation4 + $0x1068] sm:$0xff]
    %v693 = vld [vmem:[#allocation4 + $0x1070] sm:$0xff]
    %v694 = vld [vmem:[#allocation4 + $0x1078] sm:$0xff]
    %v695 = vld [vmem:[#allocation4 + $0x1080] sm:$0xff]
    %v696 = vld [vmem:[#allocation4 + $0x1088] sm:$0xff]
    %v697 = vld [vmem:[#allocation4 + $0x1090] sm:$0xff]
    %v698 = vld [vmem:[#allocation4 + $0x1098] sm:$0xff]
    %v699 = vld [vmem:[#allocation4 + $0x10a0] sm:$0xff]
    %v700 = vld [vmem:[#allocation4 + $0x10a8] sm:$0xff]
    %v701 = vld [vmem:[#allocation4 + $0x10b0] sm:$0xff]
    %v702 = vld [vmem:[#allocation4 + $0x10b8] sm:$0xff]
    %v703 = vld [vmem:[#allocation4 + $0x10c0] sm:$0xff]
    %v704 = vld [vmem:[#allocation4 + $0x10c8] sm:$0xff]
    %v705 = vld [vmem:[#allocation4 + $0x10d0] sm:$0xff]
    %v706 = vld [vmem:[#allocation4 + $0x10d8] sm:$0xff]
    %v707 = vld [vmem:[#allocation4 + $0x10e0] sm:$0xff]
    %v708 = vld [vmem:[#allocation4 + $0x10e8] sm:$0xff]
    %v709 = vld [vmem:[#allocation4 + $0x10f0] sm:$0xff]
    %v710 = vld [vmem:[#allocation4 + $0x10f8] sm:$0xff]
    %v711 = vld [vmem:[#allocation4 + $0x1100] sm:$0xff]
    %v712 = vld [vmem:[#allocation4 + $0x1108] sm:$0xff]
    %v713 = vld [vmem:[#allocation4 + $0x1110] sm:$0xff]
    %v714 = vld [vmem:[#allocation4 + $0x1118] sm:$0xff]
    %v715 = vld [vmem:[#allocation4 + $0x1120] sm:$0xff]
    %v716 = vld [vmem:[#allocation4 + $0x1128] sm:$0xff]
    %v717 = vld [vmem:[#allocation4 + $0x1130] sm:$0xff]
    %v718 = vld [vmem:[#allocation4 + $0x1138] sm:$0xff]
    %v719 = vld [vmem:[#allocation4 + $0x1140] sm:$0xff]
    %v720 = vld [vmem:[#allocation4 + $0x1148] sm:$0xff]
    %v721 = vld [vmem:[#allocation4 + $0x1150] sm:$0xff]
    %v722 = vld [vmem:[#allocation4 + $0x1158] sm:$0xff]
    %v723 = vld [vmem:[#allocation4 + $0x1160] sm:$0xff]
    %v724 = vld [vmem:[#allocation4 + $0x1168] sm:$0xff]
    %v725 = vld [vmem:[#allocation4 + $0x1170] sm:$0xff]
    %v726 = vld [vmem:[#allocation4 + $0x1178] sm:$0xff]
    %v727 = vld [vmem:[#allocation4 + $0x1180] sm:$0xff]
    %v728 = vld [vmem:[#allocation4 + $0x1188] sm:$0xff]
    %v729 = vld [vmem:[#allocation4 + $0x1190] sm:$0xff]
    %v730 = vld [vmem:[#allocation4 + $0x1198] sm:$0xff]
    %v731 = vld [vmem:[#allocation4 + $0x11a0] sm:$0xff]
    %v732 = vld [vmem:[#allocation4 + $0x11a8] sm:$0xff]
    %v733 = vld [vmem:[#allocation4 + $0x11b0] sm:$0xff]
    %v734 = vld [vmem:[#allocation4 + $0x11b8] sm:$0xff]
    %v735 = vld [vmem:[#allocation4 + $0x11c0] sm:$0xff]
    %v736 = vld [vmem:[#allocation4 + $0x11c8] sm:$0xff]
    %v737 = vld [vmem:[#allocation4 + $0x11d0] sm:$0xff]
    %v738 = vld [vmem:[#allocation4 + $0x11d8] sm:$0xff]
    %v739 = vld [vmem:[#allocation4 + $0x11e0] sm:$0xff]
    %v740 = vld [vmem:[#allocation4 + $0x11e8] sm:$0xff]
    %v741 = vld [vmem:[#allocation4 + $0x11f0] sm:$0xff]
    %v742 = vld [vmem:[#allocation4 + $0x11f8] sm:$0xff]
    %v743 = vld [vmem:[#allocation4 + $0x1200] sm:$0xff]
    %v744 = vld [vmem:[#allocation4 + $0x1208] sm:$0xff]
    %v745 = vld [vmem:[#allocation4 + $0x1210] sm:$0xff]
    %v746 = vld [vmem:[#allocation4 + $0x1218] sm:$0xff]
    %v747 = vld [vmem:[#allocation4 + $0x1220] sm:$0xff]
    %v748 = vld [vmem:[#allocation4 + $0x1228] sm:$0xff]
    %v749 = vld [vmem:[#allocation4 + $0x1230] sm:$0xff]
    %v750 = vld [vmem:[#allocation4 + $0x1238] sm:$0xff]
    %v751 = vld [vmem:[#allocation4 + $0x1240] sm:$0xff]
    %v752 = vld [vmem:[#allocation4 + $0x1248] sm:$0xff]
    %v753 = vld [vmem:[#allocation4 + $0x1250] sm:$0xff]
    %v754 = vld [vmem:[#allocation4 + $0x1258] sm:$0xff]
    %v755 = vld [vmem:[#allocation4 + $0x1260] sm:$0xff]
    %v756 = vld [vmem:[#allocation4 + $0x1268] sm:$0xff]
    %v757 = vld [vmem:[#allocation4 + $0x1270] sm:$0xff]
    %v758 = vld [vmem:[#allocation4 + $0x1278] sm:$0xff]
    %v759 = vld [vmem:[#allocation4 + $0x1280] sm:$0xff]
    %v760 = vld [vmem:[#allocation4 + $0x1288] sm:$0xff]
    %v761 = vld [vmem:[#allocation4 + $0x1290] sm:$0xff]
    %v762 = vld [vmem:[#allocation4 + $0x1298] sm:$0xff]
    %v763 = vld [vmem:[#allocation4 + $0x12a0] sm:$0xff]
    %v764 = vld [vmem:[#allocation4 + $0x12a8] sm:$0xff]
    %v765 = vld [vmem:[#allocation4 + $0x12b0] sm:$0xff]
    %v766 = vld [vmem:[#allocation4 + $0x12b8] sm:$0xff]
    %v767 = vld [vmem:[#allocation4 + $0x12c0] sm:$0xff]
    %v768 = vld [vmem:[#allocation4 + $0x12c8] sm:$0xff]
    %v769 = vld [vmem:[#allocation4 + $0x12d0] sm:$0xff]
    %v770 = vld [vmem:[#allocation4 + $0x12d8] sm:$0xff]
    %v771 = vld [vmem:[#allocation4 + $0x12e0] sm:$0xff]
    %v772 = vld [vmem:[#allocation4 + $0x12e8] sm:$0xff]
    %v773 = vld [vmem:[#allocation4 + $0x12f0] sm:$0xff]
    %v774 = vld [vmem:[#allocation4 + $0x12f8] sm:$0xff]
    %v775 = vld [vmem:[#allocation4 + $0x1300] sm:$0xff]
    %v776 = vld [vmem:[#allocation4 + $0x1308] sm:$0xff]
    %v777 = vld [vmem:[#allocation4 + $0x1310] sm:$0xff]
    %v778 = vld [vmem:[#allocation4 + $0x1318] sm:$0xff]
    %v779 = vld [vmem:[#allocation4 + $0x1320] sm:$0xff]
    %v780 = vld [vmem:[#allocation4 + $0x1328] sm:$0xff]
    %v781 = vld [vmem:[#allocation4 + $0x1330] sm:$0xff]
    %v782 = vld [vmem:[#allocation4 + $0x1338] sm:$0xff]
    %v783 = vld [vmem:[#allocation4 + $0x1340] sm:$0xff]
    %v784 = vld [vmem:[#allocation4 + $0x1348] sm:$0xff]
    %v785 = vld [vmem:[#allocation4 + $0x1350] sm:$0xff]
    %v786 = vld [vmem:[#allocation4 + $0x1358] sm:$0xff]
    %v787 = vld [vmem:[#allocation4 + $0x1360] sm:$0xff]
    %v788 = vld [vmem:[#allocation4 + $0x1368] sm:$0xff]
    %v789 = vld [vmem:[#allocation4 + $0x1370] sm:$0xff]
    %v790 = vld [vmem:[#allocation4 + $0x1378] sm:$0xff]
    %v791 = vld [vmem:[#allocation4 + $0x1380] sm:$0xff]
    %v792 = vld [vmem:[#allocation4 + $0x1388] sm:$0xff]
    %v793 = vld [vmem:[#allocation4 + $0x1390] sm:$0xff]
    %v794 = vld [vmem:[#allocation4 + $0x1398] sm:$0xff]
    %v795 = vld [vmem:[#allocation4 + $0x13a0] sm:$0xff]
    %v796 = vld [vmem:[#allocation4 + $0x13a8] sm:$0xff]
    %v797 = vld [vmem:[#allocation4 + $0x13b0] sm:$0xff]
    %v798 = vld [vmem:[#allocation4 + $0x13b8] sm:$0xff]
    %v799 = vld [vmem:[#allocation4 + $0x13c0] sm:$0xff]
    %v800 = vld [vmem:[#allocation4 + $0x13c8] sm:$0xff]
    %v801 = vld [vmem:[#allocation4 + $0x13d0] sm:$0xff]
    %v802 = vld [vmem:[#allocation4 + $0x13d8] sm:$0xff]
    %v803 = vld [vmem:[#allocation4 + $0x13e0] sm:$0xff]
    %v804 = vld [vmem:[#allocation4 + $0x13e8] sm:$0xff]
    %v805 = vld [vmem:[#allocation4 + $0x13f0] sm:$0xff]
    %v806 = vld [vmem:[#allocation4 + $0x13f8] sm:$0xff]
    %v807 = vld [vmem:[#allocation4 + $0x1400] sm:$0xff]
    %v808 = vld [vmem:[#allocation4 + $0x1408] sm:$0xff]
    %v809 = vld [vmem:[#allocation4 + $0x1410] sm:$0xff]
    %v810 = vld [vmem:[#allocation4 + $0x1418] sm:$0xff]
    %v811 = vld [vmem:[#allocation4 + $0x1420] sm:$0xff]
    %v812 = vld [vmem:[#allocation4 + $0x1428] sm:$0xff]
    %v813 = vld [vmem:[#allocation4 + $0x1430] sm:$0xff]
    %v814 = vld [vmem:[#allocation4 + $0x1438] sm:$0xff]
    %v815 = vld [vmem:[#allocation4 + $0x1440] sm:$0xff]
    %v816 = vld [vmem:[#allocation4 + $0x1448] sm:$0xff]
    %v817 = vld [vmem:[#allocation4 + $0x1450] sm:$0xff]
    %v818 = vld [vmem:[#allocation4 + $0x1458] sm:$0xff]
    %v819 = vld [vmem:[#allocation4 + $0x1460] sm:$0xff]
    %v820 = vld [vmem:[#allocation4 + $0x1468] sm:$0xff]
    %v821 = vld [vmem:[#allocation4 + $0x1470] sm:$0xff]
    %v822 = vld [vmem:[#allocation4 + $0x1478] sm:$0xff]
    %v823 = vld [vmem:[#allocation4 + $0x1480] sm:$0xff]
    %v824 = vld [vmem:[#allocation4 + $0x1488] sm:$0xff]
    %v825 = vld [vmem:[#allocation4 + $0x1490] sm:$0xff]
    %v826 = vld [vmem:[#allocation4 + $0x1498] sm:$0xff]
    %v827 = vld [vmem:[#allocation4 + $0x14a0] sm:$0xff]
    %v828 = vld [vmem:[#allocation4 + $0x14a8] sm:$0xff]
    %v829 = vld [vmem:[#allocation4 + $0x14b0] sm:$0xff]
    %v830 = vld [vmem:[#allocation4 + $0x14b8] sm:$0xff]
    %v831 = vld [vmem:[#allocation4 + $0x14c0] sm:$0xff]
    %v832 = vld [vmem:[#allocation4 + $0x14c8] sm:$0xff]
    %v833 = vld [vmem:[#allocation4 + $0x14d0] sm:$0xff]
    %v834 = vld [vmem:[#allocation4 + $0x14d8] sm:$0xff]
    %v835 = vld [vmem:[#allocation4 + $0x14e0] sm:$0xff]
    %v836 = vld [vmem:[#allocation4 + $0x14e8] sm:$0xff]
    %v837 = vld [vmem:[#allocation4 + $0x14f0] sm:$0xff]
    %v838 = vld [vmem:[#allocation4 + $0x14f8] sm:$0xff]
    %v839 = vld [vmem:[#allocation4 + $0x1500] sm:$0xff]
    %v840 = vld [vmem:[#allocation4 + $0x1508] sm:$0xff]
    %v841 = vld [vmem:[#allocation4 + $0x1510] sm:$0xff]
    %v842 = vld [vmem:[#allocation4 + $0x1518] sm:$0xff]
    %v843 = vld [vmem:[#allocation4 + $0x1520] sm:$0xff]
    %v844 = vld [vmem:[#allocation4 + $0x1528] sm:$0xff]
    %v845 = vld [vmem:[#allocation4 + $0x1530] sm:$0xff]
    %v846 = vld [vmem:[#allocation4 + $0x1538] sm:$0xff]
    %v847 = vld [vmem:[#allocation4 + $0x1540] sm:$0xff]
    %v848 = vld [vmem:[#allocation4 + $0x1548] sm:$0xff]
    %v849 = vld [vmem:[#allocation4 + $0x1550] sm:$0xff]
    %v850 = vld [vmem:[#allocation4 + $0x1558] sm:$0xff]
    %v851 = vld [vmem:[#allocation4 + $0x1560] sm:$0xff]
    %v852 = vld [vmem:[#allocation4 + $0x1568] sm:$0xff]
    %v853 = vld [vmem:[#allocation4 + $0x1570] sm:$0xff]
    %v854 = vld [vmem:[#allocation4 + $0x1578] sm:$0xff]
    %v855 = vld [vmem:[#allocation4 + $0x1580] sm:$0xff]
    %v856 = vld [vmem:[#allocation4 + $0x1588] sm:$0xff]
    %v857 = vld [vmem:[#allocation4 + $0x1590] sm:$0xff]
    %v858 = vld [vmem:[#allocation4 + $0x1598] sm:$0xff]
    %v859 = vld [vmem:[#allocation4 + $0x15a0] sm:$0xff]
    %v860 = vld [vmem:[#allocation4 + $0x15a8] sm:$0xff]
    %v861 = vld [vmem:[#allocation4 + $0x15b0] sm:$0xff]
    %v862 = vld [vmem:[#allocation4 + $0x15b8] sm:$0xff]
    %v863 = vld [vmem:[#allocation4 + $0x15c0] sm:$0xff]
    %v864 = vld [vmem:[#allocation4 + $0x15c8] sm:$0xff]
    %v865 = vld [vmem:[#allocation4 + $0x15d0] sm:$0xff]
    %v866 = vld [vmem:[#allocation4 + $0x15d8] sm:$0xff]
    %v867 = vld [vmem:[#allocation4 + $0x15e0] sm:$0xff]
    %v868 = vld [vmem:[#allocation4 + $0x15e8] sm:$0xff]
    %v869 = vld [vmem:[#allocation4 + $0x15f0] sm:$0xff]
    %v870 = vld [vmem:[#allocation4 + $0x15f8] sm:$0xff]
    %v871 = vld [vmem:[#allocation4 + $0x1600] sm:$0xff]
    %v872 = vld [vmem:[#allocation4 + $0x1608] sm:$0xff]
    %v873 = vld [vmem:[#allocation4 + $0x1610] sm:$0xff]
    %v874 = vld [vmem:[#allocation4 + $0x1618] sm:$0xff]
    %v875 = vld [vmem:[#allocation4 + $0x1620] sm:$0xff]
    %v876 = vld [vmem:[#allocation4 + $0x1628] sm:$0xff]
    %v877 = vld [vmem:[#allocation4 + $0x1630] sm:$0xff]
    %v878 = vld [vmem:[#allocation4 + $0x1638] sm:$0xff]
    %v879 = vld [vmem:[#allocation4 + $0x1640] sm:$0xff]
    %v880 = vld [vmem:[#allocation4 + $0x1648] sm:$0xff]
    %v881 = vld [vmem:[#allocation4 + $0x1650] sm:$0xff]
    %v882 = vld [vmem:[#allocation4 + $0x1658] sm:$0xff]
    %v883 = vld [vmem:[#allocation4 + $0x1660] sm:$0xff]
    %v884 = vld [vmem:[#allocation4 + $0x1668] sm:$0xff]
    %v885 = vld [vmem:[#allocation4 + $0x1670] sm:$0xff]
    %v886 = vld [vmem:[#allocation4 + $0x1678] sm:$0xff]
    %v887 = vld [vmem:[#allocation4 + $0x1680] sm:$0xff]
    %v888 = vld [vmem:[#allocation4 + $0x1688] sm:$0xff]
    %v889 = vld [vmem:[#allocation4 + $0x1690] sm:$0xff]
    %v890 = vld [vmem:[#allocation4 + $0x1698] sm:$0xff]
    %v891 = vld [vmem:[#allocation4 + $0x16a0] sm:$0xff]
    %v892 = vld [vmem:[#allocation4 + $0x16a8] sm:$0xff]
    %v893 = vld [vmem:[#allocation4 + $0x16b0] sm:$0xff]
    %v894 = vld [vmem:[#allocation4 + $0x16b8] sm:$0xff]
    %v895 = vld [vmem:[#allocation4 + $0x16c0] sm:$0xff]
    %v896 = vld [vmem:[#allocation4 + $0x16c8] sm:$0xff]
    %v897 = vld [vmem:[#allocation4 + $0x16d0] sm:$0xff]
    %v898 = vld [vmem:[#allocation4 + $0x16d8] sm:$0xff]
    %v899 = vld [vmem:[#allocation4 + $0x16e0] sm:$0xff]
    %v900 = vld [vmem:[#allocation4 + $0x16e8] sm:$0xff]
    %v901 = vld [vmem:[#allocation4 + $0x16f0] sm:$0xff]
    %v902 = vld [vmem:[#allocation4 + $0x16f8] sm:$0xff]
    %v903 = vld [vmem:[#allocation4 + $0x1700] sm:$0xff]
    %v904 = vld [vmem:[#allocation4 + $0x1708] sm:$0xff]
    %v905 = vld [vmem:[#allocation4 + $0x1710] sm:$0xff]
    %v906 = vld [vmem:[#allocation4 + $0x1718] sm:$0xff]
    %v907 = vld [vmem:[#allocation4 + $0x1720] sm:$0xff]
    %v908 = vld [vmem:[#allocation4 + $0x1728] sm:$0xff]
    %v909 = vld [vmem:[#allocation4 + $0x1730] sm:$0xff]
    %v910 = vld [vmem:[#allocation4 + $0x1738] sm:$0xff]
    %v911 = vld [vmem:[#allocation4 + $0x1740] sm:$0xff]
    %v912 = vld [vmem:[#allocation4 + $0x1748] sm:$0xff]
    %v913 = vld [vmem:[#allocation4 + $0x1750] sm:$0xff]
    %v914 = vld [vmem:[#allocation4 + $0x1758] sm:$0xff]
    %v915 = vld [vmem:[#allocation4 + $0x1760] sm:$0xff]
    %v916 = vld [vmem:[#allocation4 + $0x1768] sm:$0xff]
    %v917 = vld [vmem:[#allocation4 + $0x1770] sm:$0xff]
    %v918 = vld [vmem:[#allocation4 + $0x1778] sm:$0xff]
    %v919 = vld [vmem:[#allocation4 + $0x1780] sm:$0xff]
    %v920 = vld [vmem:[#allocation4 + $0x1788] sm:$0xff]
    %v921 = vld [vmem:[#allocation4 + $0x1790] sm:$0xff]
    %v922 = vld [vmem:[#allocation4 + $0x1798] sm:$0xff]
    %v923 = vld [vmem:[#allocation4 + $0x17a0] sm:$0xff]
    %v924 = vld [vmem:[#allocation4 + $0x17a8] sm:$0xff]
    %v925 = vld [vmem:[#allocation4 + $0x17b0] sm:$0xff]
    %v926 = vld [vmem:[#allocation4 + $0x17b8] sm:$0xff]
    %v927 = vld [vmem:[#allocation4 + $0x17c0] sm:$0xff]
    %v928 = vld [vmem:[#allocation4 + $0x17c8] sm:$0xff]
    %v929 = vld [vmem:[#allocation4 + $0x17d0] sm:$0xff]
    %v930 = vld [vmem:[#allocation4 + $0x17d8] sm:$0xff]
    %v931 = vld [vmem:[#allocation4 + $0x17e0] sm:$0xff]
    %v932 = vld [vmem:[#allocation4 + $0x17e8] sm:$0xff]
    %v933 = vld [vmem:[#allocation4 + $0x17f0] sm:$0xff]
    %v934 = vld [vmem:[#allocation4 + $0x17f8] sm:$0xff]
    %v935 = vld [vmem:[#allocation4 + $0x1800] sm:$0xff]
    %v936 = vld [vmem:[#allocation4 + $0x1808] sm:$0xff]
    %v937 = vld [vmem:[#allocation4 + $0x1810] sm:$0xff]
    %v938 = vld [vmem:[#allocation4 + $0x1818] sm:$0xff]
    %v939 = vld [vmem:[#allocation4 + $0x1820] sm:$0xff]
    %v940 = vld [vmem:[#allocation4 + $0x1828] sm:$0xff]
    %v941 = vld [vmem:[#allocation4 + $0x1830] sm:$0xff]
    %v942 = vld [vmem:[#allocation4 + $0x1838] sm:$0xff]
    %v943 = vld [vmem:[#allocation4 + $0x1840] sm:$0xff]
    %v944 = vld [vmem:[#allocation4 + $0x1848] sm:$0xff]
    %v945 = vld [vmem:[#allocation4 + $0x1850] sm:$0xff]
    %v946 = vld [vmem:[#allocation4 + $0x1858] sm:$0xff]
    %v947 = vld [vmem:[#allocation4 + $0x1860] sm:$0xff]
    %v948 = vld [vmem:[#allocation4 + $0x1868] sm:$0xff]
    %v949 = vld [vmem:[#allocation4 + $0x1870] sm:$0xff]
    %v950 = vld [vmem:[#allocation4 + $0x1878] sm:$0xff]
    %v951 = vld [vmem:[#allocation4 + $0x1880] sm:$0xff]
    %v952 = vld [vmem:[#allocation4 + $0x1888] sm:$0xff]
    %v953 = vld [vmem:[#allocation4 + $0x1890] sm:$0xff]
    %v954 = vld [vmem:[#allocation4 + $0x1898] sm:$0xff]
    %v955 = vld [vmem:[#allocation4 + $0x18a0] sm:$0xff]
    %v956 = vld [vmem:[#allocation4 + $0x18a8] sm:$0xff]
    %v957 = vld [vmem:[#allocation4 + $0x18b0] sm:$0xff]
    %v958 = vld [vmem:[#allocation4 + $0x18b8] sm:$0xff]
    %v959 = vld [vmem:[#allocation4 + $0x18c0] sm:$0xff]
    %v960 = vld [vmem:[#allocation4 + $0x18c8] sm:$0xff]
    %v961 = vld [vmem:[#allocation4 + $0x18d0] sm:$0xff]
    %v962 = vld [vmem:[#allocation4 + $0x18d8] sm:$0xff]
    %v963 = vld [vmem:[#allocation4 + $0x18e0] sm:$0xff]
    %v964 = vld [vmem:[#allocation4 + $0x18e8] sm:$0xff]
    %v965 = vld [vmem:[#allocation4 + $0x18f0] sm:$0xff]
    %v966 = vld [vmem:[#allocation4 + $0x18f8] sm:$0xff]
    %v967 = vld [vmem:[#allocation4 + $0x1900] sm:$0xff]
    %v968 = vld [vmem:[#allocation4 + $0x1908] sm:$0xff]
    %v969 = vld [vmem:[#allocation4 + $0x1910] sm:$0xff]
    %v970 = vld [vmem:[#allocation4 + $0x1918] sm:$0xff]
    %v971 = vld [vmem:[#allocation4 + $0x1920] sm:$0xff]
    %v972 = vld [vmem:[#allocation4 + $0x1928] sm:$0xff]
    %v973 = vld [vmem:[#allocation4 + $0x1930] sm:$0xff]
    %v974 = vld [vmem:[#allocation4 + $0x1938] sm:$0xff]
    %v975 = vld [vmem:[#allocation4 + $0x1940] sm:$0xff]
    %v976 = vld [vmem:[#allocation4 + $0x1948] sm:$0xff]
    %v977 = vld [vmem:[#allocation4 + $0x1950] sm:$0xff]
    %v978 = vld [vmem:[#allocation4 + $0x1958] sm:$0xff]
    %v979 = vld [vmem:[#allocation4 + $0x1960] sm:$0xff]
    %v980 = vld [vmem:[#allocation4 + $0x1968] sm:$0xff]
    %v981 = vld [vmem:[#allocation4 + $0x1970] sm:$0xff]
    %v982 = vld [vmem:[#allocation4 + $0x1978] sm:$0xff]
    %v983 = vld [vmem:[#allocation4 + $0x1980] sm:$0xff]
    %v984 = vld [vmem:[#allocation4 + $0x1988] sm:$0xff]
    %v985 = vld [vmem:[#allocation4 + $0x1990] sm:$0xff]
    %v986 = vld [vmem:[#allocation4 + $0x1998] sm:$0xff]
    %v987 = vld [vmem:[#allocation4 + $0x19a0] sm:$0xff]
    %v988 = vld [vmem:[#allocation4 + $0x19a8] sm:$0xff]
    %v989 = vld [vmem:[#allocation4 + $0x19b0] sm:$0xff]
    %v990 = vld [vmem:[#allocation4 + $0x19b8] sm:$0xff]
    %v991 = vld [vmem:[#allocation4 + $0x19c0] sm:$0xff]
    %v992 = vld [vmem:[#allocation4 + $0x19c8] sm:$0xff]
    %v993 = vld [vmem:[#allocation4 + $0x19d0] sm:$0xff]
    %v994 = vld [vmem:[#allocation4 + $0x19d8] sm:$0xff]
    %v995 = vld [vmem:[#allocation4 + $0x19e0] sm:$0xff]
    %v996 = vld [vmem:[#allocation4 + $0x19e8] sm:$0xff]
    %v997 = vld [vmem:[#allocation4 + $0x19f0] sm:$0xff]
    %v998 = vld [vmem:[#allocation4 + $0x19f8] sm:$0xff]
    %v999 = vld [vmem:[#allocation4 + $0x1a00] sm:$0xff]
    %v1000 = vld [vmem:[#allocation4 + $0x1a08] sm:$0xff]
    %v1001 = vld [vmem:[#allocation4 + $0x1a10] sm:$0xff]
    %v1002 = vld [vmem:[#allocation4 + $0x1a18] sm:$0xff]
    %v1003 = vld [vmem:[#allocation4 + $0x1a20] sm:$0xff]
    %v1004 = vld [vmem:[#allocation4 + $0x1a28] sm:$0xff]
    %v1005 = vld [vmem:[#allocation4 + $0x1a30] sm:$0xff]
    %v1006 = vld [vmem:[#allocation4 + $0x1a38] sm:$0xff]
    %v1007 = vld [vmem:[#allocation4 + $0x1a40] sm:$0xff]
    %v1008 = vld [vmem:[#allocation4 + $0x1a48] sm:$0xff]
    %v1009 = vld [vmem:[#allocation4 + $0x1a50] sm:$0xff]
    %v1010 = vld [vmem:[#allocation4 + $0x1a58] sm:$0xff]
    %v1011 = vld [vmem:[#allocation4 + $0x1a60] sm:$0xff]
    %v1012 = vld [vmem:[#allocation4 + $0x1a68] sm:$0xff]
    %v1013 = vld [vmem:[#allocation4 + $0x1a70] sm:$0xff]
    %v1014 = vld [vmem:[#allocation4 + $0x1a78] sm:$0xff]
    %v1015 = vld [vmem:[#allocation4 + $0x1a80] sm:$0xff]
    %v1016 = vld [vmem:[#allocation4 + $0x1a88] sm:$0xff]
    %v1017 = vld [vmem:[#allocation4 + $0x1a90] sm:$0xff]
    %v1018 = vld [vmem:[#allocation4 + $0x1a98] sm:$0xff]
    %v1019 = vld [vmem:[#allocation4 + $0x1aa0] sm:$0xff]
    %v1020 = vld [vmem:[#allocation4 + $0x1aa8] sm:$0xff]
    %v1021 = vld [vmem:[#allocation4 + $0x1ab0] sm:$0xff]
    %v1022 = vld [vmem:[#allocation4 + $0x1ab8] sm:$0xff]
    %v1023 = vld [vmem:[#allocation4 + $0x1ac0] sm:$0xff]
    %v1024 = vld [vmem:[#allocation4 + $0x1ac8] sm:$0xff]
    %v1025 = vld [vmem:[#allocation4 + $0x1ad0] sm:$0xff]
    %v1026 = vld [vmem:[#allocation4 + $0x1ad8] sm:$0xff]
    %v1027 = vld [vmem:[#allocation4 + $0x1ae0] sm:$0xff]
    %v1028 = vld [vmem:[#allocation4 + $0x1ae8] sm:$0xff]
    %v1029 = vld [vmem:[#allocation4 + $0x1af0] sm:$0xff]
    %v1030 = vld [vmem:[#allocation4 + $0x1af8] sm:$0xff]
    %1031 = vmatprep.subr.mxu0 %v168
    %1032 = vmatpush1.msra.mxu0 %v167
    %1033 = vmatprep.subr.mxu0 %v174
    %1034 = vmatpush1.msra.mxu0 %v173
    %1035 = vmatprep.subr.mxu0 %v180
    %1036 = vmatpush1.msra.mxu0 %v179
    %1037 = vmatprep.subr.mxu0 %v186
    %1038 = vmatpush1.msra.mxu0 %v185
    %1039 = vmatprep.subr.mxu0 %v192
    %1040 = vmatpush1.msra.mxu0 %v191
    %1041 = vmatprep.subr.mxu0 %v198
    %1042 = vmatpush1.msra.mxu0 %v197
    %1043 = vmatprep.subr.mxu0 %v204
    %1044 = vmatpush1.msra.mxu0 %v203
    %1045 = vmatprep.subr.mxu0 %v210
    %1046 = vmatpush1.msra.mxu0 %v209
    %1047 = vmatprep.subr.mxu0 %v216
    %1048 = vmatpush1.msra.mxu0 %v215
    %1049 = vmatprep.subr.mxu0 %v222
    %1050 = vmatpush1.msra.mxu0 %v221
    %1051 = vmatprep.subr.mxu0 %v228
    %1052 = vmatpush1.msra.mxu0 %v227
    %1053 = vmatprep.subr.mxu0 %v234
    %1054 = vmatpush1.msra.mxu0 %v233
    %1055 = vmatprep.subr.mxu0 %v240
    %1056 = vmatpush1.msra.mxu0 %v239
    %1057 = vmatprep.subr.mxu0 %v246
    %1058 = vmatpush1.msra.mxu0 %v245
    %1059 = vmatprep.subr.mxu0 %v252
    %1060 = vmatpush1.msra.mxu0 %v251
    %1061 = vmatprep.subr.mxu0 %v258
    %1062 = vmatpush1.msra.mxu0 %v257
    %1063 = vmatprep.subr.mxu0 %v264
    %1064 = vmatpush1.msra.mxu0 %v263
    %1065 = vmatprep.subr.mxu0 %v270
    %1066 = vmatpush1.msra.mxu0 %v269
    %1067 = vmatprep.subr.mxu0 %v276
    %1068 = vmatpush1.msra.mxu0 %v275
    %1069 = vmatprep.subr.mxu0 %v282
    %1070 = vmatpush1.msra.mxu0 %v281
    %1071 = vmatprep.subr.mxu0 %v288
    %1072 = vmatpush1.msra.mxu0 %v287
    %1073 = vmatprep.subr.mxu0 %v294
    %1074 = vmatpush1.msra.mxu0 %v293
    %1075 = vmatprep.subr.mxu0 %v300
    %1076 = vmatpush1.msra.mxu0 %v299
    %1077 = vmatprep.subr.mxu0 %v306
    %1078 = vmatpush1.msra.mxu0 %v305
    %1079 = vmatprep.subr.mxu0 %v312
    %1080 = vmatpush1.msra.mxu0 %v311
    %1081 = vmatprep.subr.mxu0 %v318
    %1082 = vmatpush1.msra.mxu0 %v317
    %1083 = vmatprep.subr.mxu0 %v324
    %1084 = vmatpush1.msra.mxu0 %v323
    %1085 = vmatprep.subr.mxu0 %v330
    %1086 = vmatpush1.msra.mxu0 %v329
    %1087 = vmatprep.subr.mxu0 %v336
    %1088 = vmatpush1.msra.mxu0 %v335
    %1089 = vmatprep.subr.mxu0 %v342
    %1090 = vmatpush1.msra.mxu0 %v341
    %1091 = vmatprep.subr.mxu0 %v348
    %1092 = vmatpush1.msra.mxu0 %v347
    %1093 = vmatprep.subr.mxu0 %v354
    %1094 = vmatpush1.msra.mxu0 %v353
    %1095 = vmatprep.mubr.f32.mxu0 %v56
    %1096 = vmatmul.mubr.f32.gmra.mrb[0].mxu0 %v39
    %v1097 = vpop.f32.mrb[0].mxu0
    %v1098 = vadd.f32 0.0, %v1097
    %v1099 = vpop.f32.mrb[0].mxu0
    %v1100 = vadd.f32 0.0, %v1099
    %1101 = vmatprep.mubr.f32.mxu0 %v159
    %1102 = vmatmul.mubr.f32.gmra.mrb[0].mxu0 %v158
    %v1103 = vpop.f32.mrb[0].mxu0
    %v1104 = vadd.f32 0.0, %v1103
    %v1105 = vpop.f32.mrb[0].mxu0
    %v1106 = vadd.f32 0.0, %v1105
    %1107 = vmatprep.mubr.f32.mxu0 %v120
    %1108 = vmatmul.mubr.f32.gmra.mrb[0].mxu0 %v96
    %v1109 = vpop.f32.mrb[0].mxu0
    %v1110 = vadd.f32 0.0, %v1109
    %v1111 = vpop.f32.mrb[0].mxu0
    %v1112 = vadd.f32 0.0, %v1111
    %1113 = vmatprep.mubr.f32.mxu0 %v119
    %1114 = vmatmul.mubr.f32.gmra.mrb[0].mxu0 %v95
    %v1115 = vpop.f32.mrb[0].mxu0
    %v1116 = vadd.f32 0.0, %v1115
    %v1117 = vpop.f32.mrb[0].mxu0
    %v1118 = vadd.f32 0.0, %v1117
    %1119 = vdwg.mxu0
    %1120 = vmatprep.subr.mxu0 %v360
    %1121 = vmatpush1.msra.mxu0 %v359
    %1122 = vmatprep.subr.mxu0 %v366
    %1123 = vmatpush1.msra.mxu0 %v365
    %1124 = vmatprep.subr.mxu0 %v372
    %1125 = vmatpush1.msra.mxu0 %v371
    %1126 = vmatprep.subr.mxu0 %v378
    %1127 = vmatpush1.msra.mxu0 %v377
    %1128 = vmatprep.subr.mxu0 %v384
    %1129 = vmatpush1.msra.mxu0 %v383
    %1130 = vmatprep.subr.mxu0 %v390
    %1131 = vmatpush1.msra.mxu0 %v389
    %1132 = vmatprep.subr.mxu0 %v396
    %1133 = vmatpush1.msra.mxu0 %v395
    %1134 = vmatprep.subr.mxu0 %v402
    %1135 = vmatpush1.msra.mxu0 %v401
    %1136 = vmatprep.subr.mxu0 %v408
    %1137 = vmatpush1.msra.mxu0 %v407
    %1138 = vmatprep.subr.mxu0 %v414
    %1139 = vmatpush1.msra.mxu0 %v413
    %1140 = vmatprep.subr.mxu0 %v420
    %1141 = vmatpush1.msra.mxu0 %v419
    %1142 = vmatprep.subr.mxu0 %v426
    %1143 = vmatpush1.msra.mxu0 %v425
    %1144 = vmatprep.subr.mxu0 %v432
    %1145 = vmatpush1.msra.mxu0 %v431
    %1146 = vmatprep.subr.mxu0 %v438
    %1147 = vmatpush1.msra.mxu0 %v437
    %1148 = vmatprep.subr.mxu0 %v444
    %1149 = vmatpush1.msra.mxu0 %v443
    %1150 = vmatprep.subr.mxu0 %v450
    %1151 = vmatpush1.msra.mxu0 %v449
    %1152 = vmatprep.subr.mxu0 %v456
    %1153 = vmatpush1.msra.mxu0 %v455
    %1154 = vmatprep.subr.mxu0 %v462
    %1155 = vmatpush1.msra.mxu0 %v461
    %1156 = vmatprep.subr.mxu0 %v468
    %1157 = vmatpush1.msra.mxu0 %v467
    %1158 = vmatprep.subr.mxu0 %v474
    %1159 = vmatpush1.msra.mxu0 %v473
    %1160 = vmatprep.subr.mxu0 %v480
    %1161 = vmatpush1.msra.mxu0 %v479
    %1162 = vmatprep.subr.mxu0 %v486
    %1163 = vmatpush1.msra.mxu0 %v485
    %1164 = vmatprep.subr.mxu0 %v492
    %1165 = vmatpush1.msra.mxu0 %v491
    %1166 = vmatprep.subr.mxu0 %v498
    %1167 = vmatpush1.msra.mxu0 %v497
    %1168 = vmatprep.subr.mxu0 %v504
    %1169 = vmatpush1.msra.mxu0 %v503
    %1170 = vmatprep.subr.mxu0 %v510
    %1171 = vmatpush1.msra.mxu0 %v509
    %1172 = vmatprep.subr.mxu0 %v516
    %1173 = vmatpush1.msra.mxu0 %v515
    %1174 = vmatprep.subr.mxu0 %v522
    %1175 = vmatpush1.msra.mxu0 %v521
    %1176 = vmatprep.subr.mxu0 %v528
    %1177 = vmatpush1.msra.mxu0 %v527
    %1178 = vmatprep.subr.mxu0 %v534
    %1179 = vmatpush1.msra.mxu0 %v533
    %1180 = vmatprep.subr.mxu0 %v540
    %1181 = vmatpush1.msra.mxu0 %v539
    %1182 = vmatprep.subr.mxu0 %v546
    %1183 = vmatpush1.msra.mxu0 %v545
    %1184 = vmatprep.mubr.f32.mxu0 %v41
    %1185 = vmatmul.mubr.f32.gmra.mrb[0].mxu0 %v62
    %v1186 = vpop.f32.mrb[0].mxu0
    %v1187 = vadd.f32 %v1098, %v1186
    %v1188 = vpop.f32.mrb[0].mxu0
    %v1189 = vadd.f32 %v1100, %v1188
    %1190 = vmatprep.mubr.f32.mxu0 %v161
    %1191 = vmatmul.mubr.f32.gmra.mrb[0].mxu0 %v160
    %v1192 = vpop.f32.mrb[0].mxu0
    %v1193 = vadd.f32 %v1104, %v1192
    %v1194 = vpop.f32.mrb[0].mxu0
    %v1195 = vadd.f32 %v1106, %v1194
    %1196 = vmatprep.mubr.f32.mxu0 %v104
    %1197 = vmatmul.mubr.f32.gmra.mrb[0].mxu0 %v122
    %v1198 = vpop.f32.mrb[0].mxu0
    %v1199 = vadd.f32 %v1110, %v1198
    %v1200 = vpop.f32.mrb[0].mxu0
    %v1201 = vadd.f32 %v1112, %v1200
    %1202 = vmatprep.mubr.f32.mxu0 %v103
    %1203 = vmatmul.mubr.f32.gmra.mrb[0].mxu0 %v121
    %v1204 = vpop.f32.mrb[0].mxu0
    %v1205 = vadd.f32 %v1116, %v1204
    %v1206 = vpop.f32.mrb[0].mxu0
    %v1207 = vadd.f32 %v1118, %v1206
    %1208 = vdwg.mxu0
    %1209 = vmatprep.subr.mxu0 %v552
    %1210 = vmatpush1.msra.mxu0 %v551
    %1211 = vmatprep.subr.mxu0 %v558
    %1212 = vmatpush1.msra.mxu0 %v557
    %1213 = vmatprep.subr.mxu0 %v564
    %1214 = vmatpush1.msra.mxu0 %v563
    %1215 = vmatprep.subr.mxu0 %v570
    %1216 = vmatpush1.msra.mxu0 %v569
    %1217 = vmatprep.subr.mxu0 %v576
    %1218 = vmatpush1.msra.mxu0 %v575
    %1219 = vmatprep.subr.mxu0 %v582
    %1220 = vmatpush1.msra.mxu0 %v581
    %1221 = vmatprep.subr.mxu0 %v588
    %1222 = vmatpush1.msra.mxu0 %v587
    %1223 = vmatprep.subr.mxu0 %v594
    %1224 = vmatpush1.msra.mxu0 %v593
    %1225 = vmatprep.subr.mxu0 %v600
    %1226 = vmatpush1.msra.mxu0 %v599
    %1227 = vmatprep.subr.mxu0 %v606
    %1228 = vmatpush1.msra.mxu0 %v605
    %1229 = vmatprep.subr.mxu0 %v612
    %1230 = vmatpush1.msra.mxu0 %v611
    %1231 = vmatprep.subr.mxu0 %v618
    %1232 = vmatpush1.msra.mxu0 %v617
    %1233 = vmatprep.subr.mxu0 %v624
    %1234 = vmatpush1.msra.mxu0 %v623
    %1235 = vmatprep.subr.mxu0 %v630
    %1236 = vmatpush1.msra.mxu0 %v629
    %1237 = vmatprep.subr.mxu0 %v636
    %1238 = vmatpush1.msra.mxu0 %v635
    %1239 = vmatprep.subr.mxu0 %v642
    %1240 = vmatpush1.msra.mxu0 %v641
    %1241 = vmatprep.subr.mxu0 %v648
    %1242 = vmatpush1.msra.mxu0 %v647
    %1243 = vmatprep.subr.mxu0 %v654
    %1244 = vmatpush1.msra.mxu0 %v653
    %1245 = vmatprep.subr.mxu0 %v660
    %1246 = vmatpush1.msra.mxu0 %v659
    %1247 = vmatprep.subr.mxu0 %v666
    %1248 = vmatpush1.msra.mxu0 %v665
    %1249 = vmatprep.subr.mxu0 %v672
    %1250 = vmatpush1.msra.mxu0 %v671
    %1251 = vmatprep.subr.mxu0 %v678
    %1252 = vmatpush1.msra.mxu0 %v677
    %1253 = vmatprep.subr.mxu0 %v684
    %1254 = vmatpush1.msra.mxu0 %v683
    %1255 = vmatprep.subr.mxu0 %v690
    %1256 = vmatpush1.msra.mxu0 %v689
    %1257 = vmatprep.subr.mxu0 %v696
    %1258 = vmatpush1.msra.mxu0 %v695
    %1259 = vmatprep.subr.mxu0 %v702
    %1260 = vmatpush1.msra.mxu0 %v701
    %1261 = vmatprep.subr.mxu0 %v708
    %1262 = vmatpush1.msra.mxu0 %v707
    %1263 = vmatprep.subr.mxu0 %v714
    %1264 = vmatpush1.msra.mxu0 %v713
    %1265 = vmatprep.subr.mxu0 %v720
    %1266 = vmatpush1.msra.mxu0 %v719
    %1267 = vmatprep.subr.mxu0 %v726
    %1268 = vmatpush1.msra.mxu0 %v725
    %1269 = vmatprep.subr.mxu0 %v732
    %1270 = vmatpush1.msra.mxu0 %v731
    %1271 = vmatprep.subr.mxu0 %v738
    %1272 = vmatpush1.msra.mxu0 %v737
    %1273 = vmatprep.mubr.f32.mxu0 %v74
    %1274 = vmatmul.mubr.f32.gmra.mrb[0].mxu0 %v69
    %v1275 = vpop.f32.mrb[0].mxu0
    %v1276 = vadd.f32 %v1187, %v1275
    %v1277 = vpop.f32.mrb[0].mxu0
    %v1278 = vadd.f32 %v1189, %v1277
    %1279 = vmatprep.mubr.f32.mxu0 %v163
    %1280 = vmatmul.mubr.f32.gmra.mrb[0].mxu0 %v162
    %v1281 = vpop.f32.mrb[0].mxu0
    %v1282 = vadd.f32 %v1193, %v1281
    %v1283 = vpop.f32.mrb[0].mxu0
    %v1284 = vadd.f32 %v1195, %v1283
    %1285 = vmatprep.mubr.f32.mxu0 %v126
    %1286 = vmatmul.mubr.f32.gmra.mrb[0].mxu0 %v124
    %v1287 = vpop.f32.mrb[0].mxu0
    %v1288 = vadd.f32 %v1199, %v1287
    %v1289 = vpop.f32.mrb[0].mxu0
    %v1290 = vadd.f32 %v1201, %v1289
    %1291 = vmatprep.mubr.f32.mxu0 %v125
    %1292 = vmatmul.mubr.f32.gmra.mrb[0].mxu0 %v123
    %v1293 = vpop.f32.mrb[0].mxu0
    %v1294 = vadd.f32 %v1205, %v1293
    %v1295 = vpop.f32.mrb[0].mxu0
    %v1296 = vadd.f32 %v1207, %v1295
    %1297 = vdwg.mxu0
    %1298 = vmatprep.subr.mxu0 %v744
    %1299 = vmatpush1.msra.mxu0 %v743
    %1300 = vmatprep.subr.mxu0 %v750
    %1301 = vmatpush1.msra.mxu0 %v749
    %1302 = vmatprep.subr.mxu0 %v756
    %1303 = vmatpush1.msra.mxu0 %v755
    %1304 = vmatprep.subr.mxu0 %v762
    %1305 = vmatpush1.msra.mxu0 %v761
    %1306 = vmatprep.subr.mxu0 %v768
    %1307 = vmatpush1.msra.mxu0 %v767
    %1308 = vmatprep.subr.mxu0 %v774
    %1309 = vmatpush1.msra.mxu0 %v773
    %1310 = vmatprep.subr.mxu0 %v780
    %1311 = vmatpush1.msra.mxu0 %v779
    %1312 = vmatprep.subr.mxu0 %v786
    %1313 = vmatpush1.msra.mxu0 %v785
    %1314 = vmatprep.subr.mxu0 %v792
    %1315 = vmatpush1.msra.mxu0 %v791
    %1316 = vmatprep.subr.mxu0 %v798
    %1317 = vmatpush1.msra.mxu0 %v797
    %1318 = vmatprep.subr.mxu0 %v804
    %1319 = vmatpush1.msra.mxu0 %v803
    %1320 = vmatprep.subr.mxu0 %v810
    %1321 = vmatpush1.msra.mxu0 %v809
    %1322 = vmatprep.subr.mxu0 %v816
    %1323 = vmatpush1.msra.mxu0 %v815
    %1324 = vmatprep.subr.mxu0 %v822
    %1325 = vmatpush1.msra.mxu0 %v821
    %1326 = vmatprep.subr.mxu0 %v828
    %1327 = vmatpush1.msra.mxu0 %v827
    %1328 = vmatprep.subr.mxu0 %v834
    %1329 = vmatpush1.msra.mxu0 %v833
    %1330 = vmatprep.subr.mxu0 %v840
    %1331 = vmatpush1.msra.mxu0 %v839
    %1332 = vmatprep.subr.mxu0 %v846
    %1333 = vmatpush1.msra.mxu0 %v845
    %1334 = vmatprep.subr.mxu0 %v852
    %1335 = vmatpush1.msra.mxu0 %v851
    %1336 = vmatprep.subr.mxu0 %v858
    %1337 = vmatpush1.msra.mxu0 %v857
    %1338 = vmatprep.subr.mxu0 %v864
    %1339 = vmatpush1.msra.mxu0 %v863
    %1340 = vmatprep.subr.mxu0 %v870
    %1341 = vmatpush1.msra.mxu0 %v869
    %1342 = vmatprep.subr.mxu0 %v876
    %1343 = vmatpush1.msra.mxu0 %v875
    %1344 = vmatprep.subr.mxu0 %v882
    %1345 = vmatpush1.msra.mxu0 %v881
    %1346 = vmatprep.subr.mxu0 %v888
    %1347 = vmatpush1.msra.mxu0 %v887
    %1348 = vmatprep.subr.mxu0 %v894
    %1349 = vmatpush1.msra.mxu0 %v893
    %1350 = vmatprep.subr.mxu0 %v900
    %1351 = vmatpush1.msra.mxu0 %v899
    %1352 = vmatprep.subr.mxu0 %v906
    %1353 = vmatpush1.msra.mxu0 %v905
    %1354 = vmatprep.subr.mxu0 %v912
    %1355 = vmatpush1.msra.mxu0 %v911
    %1356 = vmatprep.subr.mxu0 %v918
    %1357 = vmatpush1.msra.mxu0 %v917
    %1358 = vmatprep.subr.mxu0 %v924
    %1359 = vmatpush1.msra.mxu0 %v923
    %1360 = vmatprep.subr.mxu0 %v930
    %1361 = vmatpush1.msra.mxu0 %v929
    %1362 = vmatprep.mubr.f32.mxu0 %v81
    %1363 = vmatmul.mubr.f32.gmra.mrb[0].mxu0 %v43
    %v1364 = vpop.f32.mrb[0].mxu0
    %v1365 = vadd.f32 %v1276, %v1364
    %v1366 = vpop.f32.mrb[0].mxu0
    %v1367 = vadd.f32 %v1278, %v1366
    %1368 = vmatprep.mubr.f32.mxu0 %v165
    %1369 = vmatmul.mubr.f32.gmra.mrb[0].mxu0 %v164
    %v1370 = vpop.f32.mrb[0].mxu0
    %v1371 = vadd.f32 %v1282, %v1370
    %v1372 = vpop.f32.mrb[0].mxu0
    %v1373 = vadd.f32 %v1284, %v1372
    %1374 = vmatprep.mubr.f32.mxu0 %v128
    %1375 = vmatmul.mubr.f32.gmra.mrb[0].mxu0 %v112
    %v1376 = vpop.f32.mrb[0].mxu0
    %v1377 = vadd.f32 %v1288, %v1376
    %v1378 = vpop.f32.mrb[0].mxu0
    %v1379 = vadd.f32 %v1290, %v1378
    %1380 = vmatprep.mubr.f32.mxu0 %v127
    %1381 = vmatmul.mubr.f32.gmra.mrb[0].mxu0 %v111
    %v1382 = vpop.f32.mrb[0].mxu0
    %v1383 = vadd.f32 %v1294, %v1382
    %v1384 = vpop.f32.mrb[0].mxu0
    %v1385 = vadd.f32 %v1296, %v1384
    %1386 = vdwg.mxu0
    %1387 = vmatprep.subr.mxu0 %v936
    %1388 = vmatpush1.msra.mxu0 %v935
    %1389 = vmatprep.subr.mxu0 %v942
    %1390 = vmatpush1.msra.mxu0 %v941
    %1391 = vmatprep.subr.mxu0 %v948
    %1392 = vmatpush1.msra.mxu0 %v947
    %1393 = vmatprep.subr.mxu0 %v954
    %1394 = vmatpush1.msra.mxu0 %v953
    %1395 = vmatprep.subr.mxu0 %v960
    %1396 = vmatpush1.msra.mxu0 %v959
    %1397 = vmatprep.subr.mxu0 %v966
    %1398 = vmatpush1.msra.mxu0 %v965
    %1399 = vmatprep.subr.mxu0 %v972
    %1400 = vmatpush1.msra.mxu0 %v971
    %1401 = vmatprep.subr.mxu0 %v978
    %1402 = vmatpush1.msra.mxu0 %v977
    %1403 = vmatprep.subr.mxu0 %v984
    %1404 = vmatpush1.msra.mxu0 %v983
    %1405 = vmatprep.subr.mxu0 %v990
    %1406 = vmatpush1.msra.mxu0 %v989
    %1407 = vmatprep.subr.mxu0 %v996
    %1408 = vmatpush1.msra.mxu0 %v995
    %1409 = vmatprep.subr.mxu0 %v1002
    %1410 = vmatpush1.msra.mxu0 %v1001
    %1411 = vmatprep.subr.mxu0 %v1008
    %1412 = vmatpush1.msra.mxu0 %v1007
    %1413 = vmatprep.subr.mxu0 %v1014
    %1414 = vmatpush1.msra.mxu0 %v1013
    %1415 = vmatprep.subr.mxu0 %v1020
    %1416 = vmatpush1.msra.mxu0 %v1019
    %1417 = vmatprep.subr.mxu0 %v1026
    %1418 = vmatpush1.msra.mxu0 %v1025
    %1419 = vmatprep.subr.mxu0 0.0
    %1420 = vmatpush1.msra.mxu0 0.0
    %1421 = vmatprep.subr.mxu0 0.0
    %1422 = vmatpush1.msra.mxu0 0.0
    %1423 = vmatprep.subr.mxu0 0.0
    %1424 = vmatpush1.msra.mxu0 0.0
    %1425 = vmatprep.subr.mxu0 0.0
    %1426 = vmatpush1.msra.mxu0 0.0
    %1427 = vmatprep.subr.mxu0 0.0
    %1428 = vmatpush1.msra.mxu0 0.0
    %1429 = vmatprep.subr.mxu0 0.0
    %1430 = vmatpush1.msra.mxu0 0.0
    %1431 = vmatprep.subr.mxu0 0.0
    %1432 = vmatpush1.msra.mxu0 0.0
    %1433 = vmatprep.subr.mxu0 0.0
    %1434 = vmatpush1.msra.mxu0 0.0
    %1435 = vmatprep.subr.mxu0 0.0
    %1436 = vmatpush1.msra.mxu0 0.0
    %1437 = vmatprep.subr.mxu0 0.0
    %1438 = vmatpush1.msra.mxu0 0.0
    %1439 = vmatprep.subr.mxu0 0.0
    %1440 = vmatpush1.msra.mxu0 0.0
    %1441 = vmatprep.subr.mxu0 0.0
    %1442 = vmatpush1.msra.mxu0 0.0
    %1443 = vmatprep.subr.mxu0 0.0
    %1444 = vmatpush1.msra.mxu0 0.0
    %1445 = vmatprep.subr.mxu0 0.0
    %1446 = vmatpush1.msra.mxu0 0.0
    %1447 = vmatprep.subr.mxu0 0.0
    %1448 = vmatpush1.msra.mxu0 0.0
    %1449 = vmatprep.subr.mxu0 0.0
    %1450 = vmatpush1.msra.mxu0 0.0
    %1451 = vmatprep.mubr.f32.mxu0 0.0
    %1452 = vmatmul.mubr.f32.gmra.mrb[0].mxu0 %v86
    %v1453 = vpop.f32.mrb[0].mxu0
    %v1454 = vadd.f32 %v1365, %v1453
    %v1455 = vpop.f32.mrb[0].mxu0
    %v1456 = vadd.f32 %v1367, %v1455
    %1457 = vmatprep.mubr.f32.mxu0 0.0
    %1458 = vmatmul.mubr.f32.gmra.mrb[0].mxu0 %v166
    %v1459 = vpop.f32.mrb[0].mxu0
    %v1460 = vadd.f32 %v1371, %v1459
    %v1461 = vpop.f32.mrb[0].mxu0
    %v1462 = vadd.f32 %v1373, %v1461
    %1463 = vmatprep.mubr.f32.mxu0 0.0
    %1464 = vmatmul.mubr.f32.gmra.mrb[0].mxu0 %v130
    %v1465 = vpop.f32.mrb[0].mxu0
    %v1466 = vadd.f32 %v1377, %v1465
    %v1467 = vpop.f32.mrb[0].mxu0
    %v1468 = vadd.f32 %v1379, %v1467
    %1469 = vmatprep.mubr.f32.mxu0 0.0
    %1470 = vmatmul.mubr.f32.gmra.mrb[0].mxu0 %v129
    %v1471 = vpop.f32.mrb[0].mxu0
    %v1472 = vadd.f32 %v1383, %v1471
    %v1473 = vpop.f32.mrb[0].mxu0
    %v1474 = vadd.f32 %v1385, %v1473
    %1475 = vdwg.mxu0
    %1476 = vmatprep.subr.mxu0 %v170
    %1477 = vmatpush1.msra.mxu0 %v169
    %1478 = vmatprep.subr.mxu0 %v176
    %1479 = vmatpush1.msra.mxu0 %v175
    %1480 = vmatprep.subr.mxu0 %v182
    %1481 = vmatpush1.msra.mxu0 %v181
    %1482 = vmatprep.subr.mxu0 %v188
    %1483 = vmatpush1.msra.mxu0 %v187
    %1484 = vmatprep.subr.mxu0 %v194
    %1485 = vmatpush1.msra.mxu0 %v193
    %1486 = vmatprep.subr.mxu0 %v200
    %1487 = vmatpush1.msra.mxu0 %v199
    %1488 = vmatprep.subr.mxu0 %v206
    %1489 = vmatpush1.msra.mxu0 %v205
    %1490 = vmatprep.subr.mxu0 %v212
    %1491 = vmatpush1.msra.mxu0 %v211
    %1492 = vmatprep.subr.mxu0 %v218
    %1493 = vmatpush1.msra.mxu0 %v217
    %1494 = vmatprep.subr.mxu0 %v224
    %1495 = vmatpush1.msra.mxu0 %v223
    %1496 = vmatprep.subr.mxu0 %v230
    %1497 = vmatpush1.msra.mxu0 %v229
    %1498 = vmatprep.subr.mxu0 %v236
    %1499 = vmatpush1.msra.mxu0 %v235
    %1500 = vmatprep.subr.mxu0 %v242
    %1501 = vmatpush1.msra.mxu0 %v241
    %1502 = vmatprep.subr.mxu0 %v248
    %1503 = vmatpush1.msra.mxu0 %v247
    %1504 = vmatprep.subr.mxu0 %v254
    %1505 = vmatpush1.msra.mxu0 %v253
    %1506 = vmatprep.subr.mxu0 %v260
    %1507 = vmatpush1.msra.mxu0 %v259
    %1508 = vmatprep.subr.mxu0 %v266
    %1509 = vmatpush1.msra.mxu0 %v265
    %1510 = vmatprep.subr.mxu0 %v272
    %1511 = vmatpush1.msra.mxu0 %v271
    %1512 = vmatprep.subr.mxu0 %v278
    %1513 = vmatpush1.msra.mxu0 %v277
    %1514 = vmatprep.subr.mxu0 %v284
    %1515 = vmatpush1.msra.mxu0 %v283
    %1516 = vmatprep.subr.mxu0 %v290
    %1517 = vmatpush1.msra.mxu0 %v289
    %1518 = vmatprep.subr.mxu0 %v296
    %1519 = vmatpush1.msra.mxu0 %v295
    %1520 = vmatprep.subr.mxu0 %v302
    %1521 = vmatpush1.msra.mxu0 %v301
    %1522 = vmatprep.subr.mxu0 %v308
    %1523 = vmatpush1.msra.mxu0 %v307
    %1524 = vmatprep.subr.mxu0 %v314
    %1525 = vmatpush1.msra.mxu0 %v313
    %1526 = vmatprep.subr.mxu0 %v320
    %1527 = vmatpush1.msra.mxu0 %v319
    %1528 = vmatprep.subr.mxu0 %v326
    %1529 = vmatpush1.msra.mxu0 %v325
    %1530 = vmatprep.subr.mxu0 %v332
    %1531 = vmatpush1.msra.mxu0 %v331
    %1532 = vmatprep.subr.mxu0 %v338
    %1533 = vmatpush1.msra.mxu0 %v337
    %1534 = vmatprep.subr.mxu0 %v344
    %1535 = vmatpush1.msra.mxu0 %v343
    %1536 = vmatprep.subr.mxu0 %v350
    %1537 = vmatpush1.msra.mxu0 %v349
    %1538 = vmatprep.subr.mxu0 %v356
    %1539 = vmatpush1.msra.mxu0 %v355
    %1540 = vmatprep.mubr.f32.mxu0 %v56
    %1541 = vmatmul.mubr.f32.gmra.mrb[0].mxu0 %v39
    %v1542 = vpop.f32.mrb[0].mxu0
    %v1543 = vadd.f32 0.0, %v1542
    %v1544 = vpop.f32.mrb[0].mxu0
    %v1545 = vadd.f32 0.0, %v1544
    %1546 = vmatprep.mubr.f32.mxu0 %v159
    %1547 = vmatmul.mubr.f32.gmra.mrb[0].mxu0 %v158
    %v1548 = vpop.f32.mrb[0].mxu0
    %v1549 = vadd.f32 0.0, %v1548
    %v1550 = vpop.f32.mrb[0].mxu0
    %v1551 = vadd.f32 0.0, %v1550
    %1552 = vmatprep.mubr.f32.mxu0 %v120
    %1553 = vmatmul.mubr.f32.gmra.mrb[0].mxu0 %v96
    %v1554 = vpop.f32.mrb[0].mxu0
    %v1555 = vadd.f32 0.0, %v1554
    %v1556 = vpop.f32.mrb[0].mxu0
    %v1557 = vadd.f32 0.0, %v1556
    %1558 = vmatprep.mubr.f32.mxu0 %v119
    %1559 = vmatmul.mubr.f32.gmra.mrb[0].mxu0 %v95
    %v1560 = vpop.f32.mrb[0].mxu0
    %v1561 = vadd.f32 0.0, %v1560
    %v1562 = vpop.f32.mrb[0].mxu0
    %v1563 = vadd.f32 0.0, %v1562
    %1564 = vdwg.mxu0
    %1565 = vmatprep.subr.mxu0 %v362
    %1566 = vmatpush1.msra.mxu0 %v361
    %1567 = vmatprep.subr.mxu0 %v368
    %1568 = vmatpush1.msra.mxu0 %v367
    %1569 = vmatprep.subr.mxu0 %v374
    %1570 = vmatpush1.msra.mxu0 %v373
    %1571 = vmatprep.subr.mxu0 %v380
    %1572 = vmatpush1.msra.mxu0 %v379
    %1573 = vmatprep.subr.mxu0 %v386
    %1574 = vmatpush1.msra.mxu0 %v385
    %1575 = vmatprep.subr.mxu0 %v392
    %1576 = vmatpush1.msra.mxu0 %v391
    %1577 = vmatprep.subr.mxu0 %v398
    %1578 = vmatpush1.msra.mxu0 %v397
    %1579 = vmatprep.subr.mxu0 %v404
    %1580 = vmatpush1.msra.mxu0 %v403
    %1581 = vmatprep.subr.mxu0 %v410
    %1582 = vmatpush1.msra.mxu0 %v409
    %1583 = vmatprep.subr.mxu0 %v416
    %1584 = vmatpush1.msra.mxu0 %v415
    %1585 = vmatprep.subr.mxu0 %v422
    %1586 = vmatpush1.msra.mxu0 %v421
    %1587 = vmatprep.subr.mxu0 %v428
    %1588 = vmatpush1.msra.mxu0 %v427
    %1589 = vmatprep.subr.mxu0 %v434
    %1590 = vmatpush1.msra.mxu0 %v433
    %1591 = vmatprep.subr.mxu0 %v440
    %1592 = vmatpush1.msra.mxu0 %v439
    %1593 = vmatprep.subr.mxu0 %v446
    %1594 = vmatpush1.msra.mxu0 %v445
    %1595 = vmatprep.subr.mxu0 %v452
    %1596 = vmatpush1.msra.mxu0 %v451
    %1597 = vmatprep.subr.mxu0 %v458
    %1598 = vmatpush1.msra.mxu0 %v457
    %1599 = vmatprep.subr.mxu0 %v464
    %1600 = vmatpush1.msra.mxu0 %v463
    %1601 = vmatprep.subr.mxu0 %v470
    %1602 = vmatpush1.msra.mxu0 %v469
    %1603 = vmatprep.subr.mxu0 %v476
    %1604 = vmatpush1.msra.mxu0 %v475
    %1605 = vmatprep.subr.mxu0 %v482
    %1606 = vmatpush1.msra.mxu0 %v481
    %1607 = vmatprep.subr.mxu0 %v488
    %1608 = vmatpush1.msra.mxu0 %v487
    %1609 = vmatprep.subr.mxu0 %v494
    %1610 = vmatpush1.msra.mxu0 %v493
    %1611 = vmatprep.subr.mxu0 %v500
    %1612 = vmatpush1.msra.mxu0 %v499
    %1613 = vmatprep.subr.mxu0 %v506
    %1614 = vmatpush1.msra.mxu0 %v505
    %1615 = vmatprep.subr.mxu0 %v512
    %1616 = vmatpush1.msra.mxu0 %v511
    %1617 = vmatprep.subr.mxu0 %v518
    %1618 = vmatpush1.msra.mxu0 %v517
    %1619 = vmatprep.subr.mxu0 %v524
    %1620 = vmatpush1.msra.mxu0 %v523
    %1621 = vmatprep.subr.mxu0 %v530
    %1622 = vmatpush1.msra.mxu0 %v529
    %1623 = vmatprep.subr.mxu0 %v536
    %1624 = vmatpush1.msra.mxu0 %v535
    %1625 = vmatprep.subr.mxu0 %v542
    %1626 = vmatpush1.msra.mxu0 %v541
    %1627 = vmatprep.subr.mxu0 %v548
    %1628 = vmatpush1.msra.mxu0 %v547
    %1629 = vmatprep.mubr.f32.mxu0 %v41
    %1630 = vmatmul.mubr.f32.gmra.mrb[0].mxu0 %v62
    %v1631 = vpop.f32.mrb[0].mxu0
    %v1632 = vadd.f32 %v1543, %v1631
    %v1633 = vpop.f32.mrb[0].mxu0
    %v1634 = vadd.f32 %v1545, %v1633
    %1635 = vmatprep.mubr.f32.mxu0 %v161
    %1636 = vmatmul.mubr.f32.gmra.mrb[0].mxu0 %v160
    %v1637 = vpop.f32.mrb[0].mxu0
    %v1638 = vadd.f32 %v1549, %v1637
    %v1639 = vpop.f32.mrb[0].mxu0
    %v1640 = vadd.f32 %v1551, %v1639
    %1641 = vmatprep.mubr.f32.mxu0 %v104
    %1642 = vmatmul.mubr.f32.gmra.mrb[0].mxu0 %v122
    %v1643 = vpop.f32.mrb[0].mxu0
    %v1644 = vadd.f32 %v1555, %v1643
    %v1645 = vpop.f32.mrb[0].mxu0
    %v1646 = vadd.f32 %v1557, %v1645
    %1647 = vmatprep.mubr.f32.mxu0 %v103
    %1648 = vmatmul.mubr.f32.gmra.mrb[0].mxu0 %v121
    %v1649 = vpop.f32.mrb[0].mxu0
    %v1650 = vadd.f32 %v1561, %v1649
    %v1651 = vpop.f32.mrb[0].mxu0
    %v1652 = vadd.f32 %v1563, %v1651
    %1653 = vdwg.mxu0
    %1654 = vmatprep.subr.mxu0 %v554
    %1655 = vmatpush1.msra.mxu0 %v553
    %1656 = vmatprep.subr.mxu0 %v560
    %1657 = vmatpush1.msra.mxu0 %v559
    %1658 = vmatprep.subr.mxu0 %v566
    %1659 = vmatpush1.msra.mxu0 %v565
    %1660 = vmatprep.subr.mxu0 %v572
    %1661 = vmatpush1.msra.mxu0 %v571
    %1662 = vmatprep.subr.mxu0 %v578
    %1663 = vmatpush1.msra.mxu0 %v577
    %1664 = vmatprep.subr.mxu0 %v584
    %1665 = vmatpush1.msra.mxu0 %v583
    %1666 = vmatprep.subr.mxu0 %v590
    %1667 = vmatpush1.msra.mxu0 %v589
    %1668 = vmatprep.subr.mxu0 %v596
    %1669 = vmatpush1.msra.mxu0 %v595
    %1670 = vmatprep.subr.mxu0 %v602
    %1671 = vmatpush1.msra.mxu0 %v601
    %1672 = vmatprep.subr.mxu0 %v608
    %1673 = vmatpush1.msra.mxu0 %v607
    %1674 = vmatprep.subr.mxu0 %v614
    %1675 = vmatpush1.msra.mxu0 %v613
    %1676 = vmatprep.subr.mxu0 %v620
    %1677 = vmatpush1.msra.mxu0 %v619
    %1678 = vmatprep.subr.mxu0 %v626
    %1679 = vmatpush1.msra.mxu0 %v625
    %1680 = vmatprep.subr.mxu0 %v632
    %1681 = vmatpush1.msra.mxu0 %v631
    %1682 = vmatprep.subr.mxu0 %v638
    %1683 = vmatpush1.msra.mxu0 %v637
    %1684 = vmatprep.subr.mxu0 %v644
    %1685 = vmatpush1.msra.mxu0 %v643
    %1686 = vmatprep.subr.mxu0 %v650
    %1687 = vmatpush1.msra.mxu0 %v649
    %1688 = vmatprep.subr.mxu0 %v656
    %1689 = vmatpush1.msra.mxu0 %v655
    %1690 = vmatprep.subr.mxu0 %v662
    %1691 = vmatpush1.msra.mxu0 %v661
    %1692 = vmatprep.subr.mxu0 %v668
    %1693 = vmatpush1.msra.mxu0 %v667
    %1694 = vmatprep.subr.mxu0 %v674
    %1695 = vmatpush1.msra.mxu0 %v673
    %1696 = vmatprep.subr.mxu0 %v680
    %1697 = vmatpush1.msra.mxu0 %v679
    %1698 = vmatprep.subr.mxu0 %v686
    %1699 = vmatpush1.msra.mxu0 %v685
    %1700 = vmatprep.subr.mxu0 %v692
    %1701 = vmatpush1.msra.mxu0 %v691
    %1702 = vmatprep.subr.mxu0 %v698
    %1703 = vmatpush1.msra.mxu0 %v697
    %1704 = vmatprep.subr.mxu0 %v704
    %1705 = vmatpush1.msra.mxu0 %v703
    %1706 = vmatprep.subr.mxu0 %v710
    %1707 = vmatpush1.msra.mxu0 %v709
    %1708 = vmatprep.subr.mxu0 %v716
    %1709 = vmatpush1.msra.mxu0 %v715
    %1710 = vmatprep.subr.mxu0 %v722
    %1711 = vmatpush1.msra.mxu0 %v721
    %1712 = vmatprep.subr.mxu0 %v728
    %1713 = vmatpush1.msra.mxu0 %v727
    %1714 = vmatprep.subr.mxu0 %v734
    %1715 = vmatpush1.msra.mxu0 %v733
    %1716 = vmatprep.subr.mxu0 %v740
    %1717 = vmatpush1.msra.mxu0 %v739
    %1718 = vmatprep.mubr.f32.mxu0 %v74
    %1719 = vmatmul.mubr.f32.gmra.mrb[0].mxu0 %v69
    %v1720 = vpop.f32.mrb[0].mxu0
    %v1721 = vadd.f32 %v1632, %v1720
    %v1722 = vpop.f32.mrb[0].mxu0
    %v1723 = vadd.f32 %v1634, %v1722
    %1724 = vmatprep.mubr.f32.mxu0 %v163
    %1725 = vmatmul.mubr.f32.gmra.mrb[0].mxu0 %v162
    %v1726 = vpop.f32.mrb[0].mxu0
    %v1727 = vadd.f32 %v1638, %v1726
    %v1728 = vpop.f32.mrb[0].mxu0
    %v1729 = vadd.f32 %v1640, %v1728
    %1730 = vmatprep.mubr.f32.mxu0 %v126
    %1731 = vmatmul.mubr.f32.gmra.mrb[0].mxu0 %v124
    %v1732 = vpop.f32.mrb[0].mxu0
    %v1733 = vadd.f32 %v1644, %v1732
    %v1734 = vpop.f32.mrb[0].mxu0
    %v1735 = vadd.f32 %v1646, %v1734
    %1736 = vmatprep.mubr.f32.mxu0 %v125
    %1737 = vmatmul.mubr.f32.gmra.mrb[0].mxu0 %v123
    %v1738 = vpop.f32.mrb[0].mxu0
    %v1739 = vadd.f32 %v1650, %v1738
    %v1740 = vpop.f32.mrb[0].mxu0
    %v1741 = vadd.f32 %v1652, %v1740
    %1742 = vdwg.mxu0
    %1743 = vmatprep.subr.mxu0 %v746
    %1744 = vmatpush1.msra.mxu0 %v745
    %1745 = vmatprep.subr.mxu0 %v752
    %1746 = vmatpush1.msra.mxu0 %v751
    %1747 = vmatprep.subr.mxu0 %v758
    %1748 = vmatpush1.msra.mxu0 %v757
    %1749 = vmatprep.subr.mxu0 %v764
    %1750 = vmatpush1.msra.mxu0 %v763
    %1751 = vmatprep.subr.mxu0 %v770
    %1752 = vmatpush1.msra.mxu0 %v769
    %1753 = vmatprep.subr.mxu0 %v776
    %1754 = vmatpush1.msra.mxu0 %v775
    %1755 = vmatprep.subr.mxu0 %v782
    %1756 = vmatpush1.msra.mxu0 %v781
    %1757 = vmatprep.subr.mxu0 %v788
    %1758 = vmatpush1.msra.mxu0 %v787
    %1759 = vmatprep.subr.mxu0 %v794
    %1760 = vmatpush1.msra.mxu0 %v793
    %1761 = vmatprep.subr.mxu0 %v800
    %1762 = vmatpush1.msra.mxu0 %v799
    %1763 = vmatprep.subr.mxu0 %v806
    %1764 = vmatpush1.msra.mxu0 %v805
    %1765 = vmatprep.subr.mxu0 %v812
    %1766 = vmatpush1.msra.mxu0 %v811
    %1767 = vmatprep.subr.mxu0 %v818
    %1768 = vmatpush1.msra.mxu0 %v817
    %1769 = vmatprep.subr.mxu0 %v824
    %1770 = vmatpush1.msra.mxu0 %v823
    %1771 = vmatprep.subr.mxu0 %v830
    %1772 = vmatpush1.msra.mxu0 %v829
    %1773 = vmatprep.subr.mxu0 %v836
    %1774 = vmatpush1.msra.mxu0 %v835
    %1775 = vmatprep.subr.mxu0 %v842
    %1776 = vmatpush1.msra.mxu0 %v841
    %1777 = vmatprep.subr.mxu0 %v848
    %1778 = vmatpush1.msra.mxu0 %v847
    %1779 = vmatprep.subr.mxu0 %v854
    %1780 = vmatpush1.msra.mxu0 %v853
    %1781 = vmatprep.subr.mxu0 %v860
    %1782 = vmatpush1.msra.mxu0 %v859
    %1783 = vmatprep.subr.mxu0 %v866
    %1784 = vmatpush1.msra.mxu0 %v865
    %1785 = vmatprep.subr.mxu0 %v872
    %1786 = vmatpush1.msra.mxu0 %v871
    %1787 = vmatprep.subr.mxu0 %v878
    %1788 = vmatpush1.msra.mxu0 %v877
    %1789 = vmatprep.subr.mxu0 %v884
    %1790 = vmatpush1.msra.mxu0 %v883
    %1791 = vmatprep.subr.mxu0 %v890
    %1792 = vmatpush1.msra.mxu0 %v889
    %1793 = vmatprep.subr.mxu0 %v896
    %1794 = vmatpush1.msra.mxu0 %v895
    %1795 = vmatprep.subr.mxu0 %v902
    %1796 = vmatpush1.msra.mxu0 %v901
    %1797 = vmatprep.subr.mxu0 %v908
    %1798 = vmatpush1.msra.mxu0 %v907
    %1799 = vmatprep.subr.mxu0 %v914
    %1800 = vmatpush1.msra.mxu0 %v913
    %1801 = vmatprep.subr.mxu0 %v920
    %1802 = vmatpush1.msra.mxu0 %v919
    %1803 = vmatprep.subr.mxu0 %v926
    %1804 = vmatpush1.msra.mxu0 %v925
    %1805 = vmatprep.subr.mxu0 %v932
    %1806 = vmatpush1.msra.mxu0 %v931
    %1807 = vmatprep.mubr.f32.mxu0 %v81
    %1808 = vmatmul.mubr.f32.gmra.mrb[0].mxu0 %v43
    %v1809 = vpop.f32.mrb[0].mxu0
    %v1810 = vadd.f32 %v1721, %v1809
    %v1811 = vpop.f32.mrb[0].mxu0
    %v1812 = vadd.f32 %v1723, %v1811
    %1813 = vmatprep.mubr.f32.mxu0 %v165
    %1814 = vmatmul.mubr.f32.gmra.mrb[0].mxu0 %v164
    %v1815 = vpop.f32.mrb[0].mxu0
    %v1816 = vadd.f32 %v1727, %v1815
    %v1817 = vpop.f32.mrb[0].mxu0
    %v1818 = vadd.f32 %v1729, %v1817
    %1819 = vmatprep.mubr.f32.mxu0 %v128
    %1820 = vmatmul.mubr.f32.gmra.mrb[0].mxu0 %v112
    %v1821 = vpop.f32.mrb[0].mxu0
    %v1822 = vadd.f32 %v1733, %v1821
    %v1823 = vpop.f32.mrb[0].mxu0
    %v1824 = vadd.f32 %v1735, %v1823
    %1825 = vmatprep.mubr.f32.mxu0 %v127
    %1826 = vmatmul.mubr.f32.gmra.mrb[0].mxu0 %v111
    %v1827 = vpop.f32.mrb[0].mxu0
    %v1828 = vadd.f32 %v1739, %v1827
    %v1829 = vpop.f32.mrb[0].mxu0
    %v1830 = vadd.f32 %v1741, %v1829
    %1831 = vdwg.mxu0
    %1832 = vmatprep.subr.mxu0 %v938
    %1833 = vmatpush1.msra.mxu0 %v937
    %1834 = vmatprep.subr.mxu0 %v944
    %1835 = vmatpush1.msra.mxu0 %v943
    %1836 = vmatprep.subr.mxu0 %v950
    %1837 = vmatpush1.msra.mxu0 %v949
    %1838 = vmatprep.subr.mxu0 %v956
    %1839 = vmatpush1.msra.mxu0 %v955
    %1840 = vmatprep.subr.mxu0 %v962
    %1841 = vmatpush1.msra.mxu0 %v961
    %1842 = vmatprep.subr.mxu0 %v968
    %1843 = vmatpush1.msra.mxu0 %v967
    %1844 = vmatprep.subr.mxu0 %v974
    %1845 = vmatpush1.msra.mxu0 %v973
    %1846 = vmatprep.subr.mxu0 %v980
    %1847 = vmatpush1.msra.mxu0 %v979
    %1848 = vmatprep.subr.mxu0 %v986
    %1849 = vmatpush1.msra.mxu0 %v985
    %1850 = vmatprep.subr.mxu0 %v992
    %1851 = vmatpush1.msra.mxu0 %v991
    %1852 = vmatprep.subr.mxu0 %v998
    %1853 = vmatpush1.msra.mxu0 %v997
    %1854 = vmatprep.subr.mxu0 %v1004
    %1855 = vmatpush1.msra.mxu0 %v1003
    %1856 = vmatprep.subr.mxu0 %v1010
    %1857 = vmatpush1.msra.mxu0 %v1009
    %1858 = vmatprep.subr.mxu0 %v1016
    %1859 = vmatpush1.msra.mxu0 %v1015
    %1860 = vmatprep.subr.mxu0 %v1022
    %1861 = vmatpush1.msra.mxu0 %v1021
    %1862 = vmatprep.subr.mxu0 %v1028
    %1863 = vmatpush1.msra.mxu0 %v1027
    %1864 = vmatprep.subr.mxu0 0.0
    %1865 = vmatpush1.msra.mxu0 0.0
    %1866 = vmatprep.subr.mxu0 0.0
    %1867 = vmatpush1.msra.mxu0 0.0
    %1868 = vmatprep.subr.mxu0 0.0
    %1869 = vmatpush1.msra.mxu0 0.0
    %1870 = vmatprep.subr.mxu0 0.0
    %1871 = vmatpush1.msra.mxu0 0.0
    %1872 = vmatprep.subr.mxu0 0.0
    %1873 = vmatpush1.msra.mxu0 0.0
    %1874 = vmatprep.subr.mxu0 0.0
    %1875 = vmatpush1.msra.mxu0 0.0
    %1876 = vmatprep.subr.mxu0 0.0
    %1877 = vmatpush1.msra.mxu0 0.0
    %1878 = vmatprep.subr.mxu0 0.0
    %1879 = vmatpush1.msra.mxu0 0.0
    %1880 = vmatprep.subr.mxu0 0.0
    %1881 = vmatpush1.msra.mxu0 0.0
    %1882 = vmatprep.subr.mxu0 0.0
    %1883 = vmatpush1.msra.mxu0 0.0
    %1884 = vmatprep.subr.mxu0 0.0
    %1885 = vmatpush1.msra.mxu0 0.0
    %1886 = vmatprep.subr.mxu0 0.0
    %1887 = vmatpush1.msra.mxu0 0.0
    %1888 = vmatprep.subr.mxu0 0.0
    %1889 = vmatpush1.msra.mxu0 0.0
    %1890 = vmatprep.subr.mxu0 0.0
    %1891 = vmatpush1.msra.mxu0 0.0
    %1892 = vmatprep.subr.mxu0 0.0
    %1893 = vmatpush1.msra.mxu0 0.0
    %1894 = vmatprep.subr.mxu0 0.0
    %1895 = vmatpush1.msra.mxu0 0.0
    %1896 = vmatprep.mubr.f32.mxu0 0.0
    %1897 = vmatmul.mubr.f32.gmra.mrb[0].mxu0 %v86
    %v1898 = vpop.f32.mrb[0].mxu0
    %v1899 = vadd.f32 %v1810, %v1898
    %v1900 = vpop.f32.mrb[0].mxu0
    %v1901 = vadd.f32 %v1812, %v1900
    %1902 = vmatprep.mubr.f32.mxu0 0.0
    %1903 = vmatmul.mubr.f32.gmra.mrb[0].mxu0 %v166
    %v1904 = vpop.f32.mrb[0].mxu0
    %v1905 = vadd.f32 %v1816, %v1904
    %v1906 = vpop.f32.mrb[0].mxu0
    %v1907 = vadd.f32 %v1818, %v1906
    %1908 = vmatprep.mubr.f32.mxu0 0.0
    %1909 = vmatmul.mubr.f32.gmra.mrb[0].mxu0 %v130
    %v1910 = vpop.f32.mrb[0].mxu0
    %v1911 = vadd.f32 %v1822, %v1910
    %v1912 = vpop.f32.mrb[0].mxu0
    %v1913 = vadd.f32 %v1824, %v1912
    %1914 = vmatprep.mubr.f32.mxu0 0.0
    %1915 = vmatmul.mubr.f32.gmra.mrb[0].mxu0 %v129
    %v1916 = vpop.f32.mrb[0].mxu0
    %v1917 = vadd.f32 %v1828, %v1916
    %v1918 = vpop.f32.mrb[0].mxu0
    %v1919 = vadd.f32 %v1830, %v1918
    %1920 = vdwg.mxu0
    %1921 = vmatprep.subr.mxu0 %v172
    %1922 = vmatpush1.msra.mxu0 %v171
    %1923 = vmatprep.subr.mxu0 %v178
    %1924 = vmatpush1.msra.mxu0 %v177
    %1925 = vmatprep.subr.mxu0 %v184
    %1926 = vmatpush1.msra.mxu0 %v183
    %1927 = vmatprep.subr.mxu0 %v190
    %1928 = vmatpush1.msra.mxu0 %v189
    %1929 = vmatprep.subr.mxu0 %v196
    %1930 = vmatpush1.msra.mxu0 %v195
    %1931 = vmatprep.subr.mxu0 %v202
    %1932 = vmatpush1.msra.mxu0 %v201
    %1933 = vmatprep.subr.mxu0 %v208
    %1934 = vmatpush1.msra.mxu0 %v207
    %1935 = vmatprep.subr.mxu0 %v214
    %1936 = vmatpush1.msra.mxu0 %v213
    %1937 = vmatprep.subr.mxu0 %v220
    %1938 = vmatpush1.msra.mxu0 %v219
    %1939 = vmatprep.subr.mxu0 %v226
    %1940 = vmatpush1.msra.mxu0 %v225
    %1941 = vmatprep.subr.mxu0 %v232
    %1942 = vmatpush1.msra.mxu0 %v231
    %1943 = vmatprep.subr.mxu0 %v238
    %1944 = vmatpush1.msra.mxu0 %v237
    %1945 = vmatprep.subr.mxu0 %v244
    %1946 = vmatpush1.msra.mxu0 %v243
    %1947 = vmatprep.subr.mxu0 %v250
    %1948 = vmatpush1.msra.mxu0 %v249
    %1949 = vmatprep.subr.mxu0 %v256
    %1950 = vmatpush1.msra.mxu0 %v255
    %1951 = vmatprep.subr.mxu0 %v262
    %1952 = vmatpush1.msra.mxu0 %v261
    %1953 = vmatprep.subr.mxu0 %v268
    %1954 = vmatpush1.msra.mxu0 %v267
    %1955 = vmatprep.subr.mxu0 %v274
    %1956 = vmatpush1.msra.mxu0 %v273
    %1957 = vmatprep.subr.mxu0 %v280
    %1958 = vmatpush1.msra.mxu0 %v279
    %1959 = vmatprep.subr.mxu0 %v286
    %1960 = vmatpush1.msra.mxu0 %v285
    %1961 = vmatprep.subr.mxu0 %v292
    %1962 = vmatpush1.msra.mxu0 %v291
    %1963 = vmatprep.subr.mxu0 %v298
    %1964 = vmatpush1.msra.mxu0 %v297
    %1965 = vmatprep.subr.mxu0 %v304
    %1966 = vmatpush1.msra.mxu0 %v303
    %1967 = vmatprep.subr.mxu0 %v310
    %1968 = vmatpush1.msra.mxu0 %v309
    %1969 = vmatprep.subr.mxu0 %v316
    %1970 = vmatpush1.msra.mxu0 %v315
    %1971 = vmatprep.subr.mxu0 %v322
    %1972 = vmatpush1.msra.mxu0 %v321
    %1973 = vmatprep.subr.mxu0 %v328
    %1974 = vmatpush1.msra.mxu0 %v327
    %1975 = vmatprep.subr.mxu0 %v334
    %1976 = vmatpush1.msra.mxu0 %v333
    %1977 = vmatprep.subr.mxu0 %v340
    %1978 = vmatpush1.msra.mxu0 %v339
    %1979 = vmatprep.subr.mxu0 %v346
    %1980 = vmatpush1.msra.mxu0 %v345
    %1981 = vmatprep.subr.mxu0 %v352
    %1982 = vmatpush1.msra.mxu0 %v351
    %1983 = vmatprep.subr.mxu0 %v358
    %1984 = vmatpush1.msra.mxu0 %v357
    %1985 = vmatprep.mubr.f32.mxu0 %v56
    %1986 = vmatmul.mubr.f32.gmra.mrb[0].mxu0 %v39
    %v1987 = vpop.f32.mrb[0].mxu0
    %v1988 = vadd.f32 0.0, %v1987
    %v1989 = vpop.f32.mrb[0].mxu0
    %v1990 = vadd.f32 0.0, %v1989
    %1991 = vmatprep.mubr.f32.mxu0 %v159
    %1992 = vmatmul.mubr.f32.gmra.mrb[0].mxu0 %v158
    %v1993 = vpop.f32.mrb[0].mxu0
    %v1994 = vadd.f32 0.0, %v1993
    %v1995 = vpop.f32.mrb[0].mxu0
    %v1996 = vadd.f32 0.0, %v1995
    %1997 = vmatprep.mubr.f32.mxu0 %v120
    %1998 = vmatmul.mubr.f32.gmra.mrb[0].mxu0 %v96
    %v1999 = vpop.f32.mrb[0].mxu0
    %v2000 = vadd.f32 0.0, %v1999
    %v2001 = vpop.f32.mrb[0].mxu0
    %v2002 = vadd.f32 0.0, %v2001
    %2003 = vmatprep.mubr.f32.mxu0 %v119
    %2004 = vmatmul.mubr.f32.gmra.mrb[0].mxu0 %v95
    %v2005 = vpop.f32.mrb[0].mxu0
    %v2006 = vadd.f32 0.0, %v2005
    %v2007 = vpop.f32.mrb[0].mxu0
    %v2008 = vadd.f32 0.0, %v2007
    %2009 = vdwg.mxu0
    %2010 = vmatprep.subr.mxu0 %v364
    %2011 = vmatpush1.msra.mxu0 %v363
    %2012 = vmatprep.subr.mxu0 %v370
    %2013 = vmatpush1.msra.mxu0 %v369
    %2014 = vmatprep.subr.mxu0 %v376
    %2015 = vmatpush1.msra.mxu0 %v375
    %2016 = vmatprep.subr.mxu0 %v382
    %2017 = vmatpush1.msra.mxu0 %v381
    %2018 = vmatprep.subr.mxu0 %v388
    %2019 = vmatpush1.msra.mxu0 %v387
    %2020 = vmatprep.subr.mxu0 %v394
    %2021 = vmatpush1.msra.mxu0 %v393
    %2022 = vmatprep.subr.mxu0 %v400
    %2023 = vmatpush1.msra.mxu0 %v399
    %2024 = vmatprep.subr.mxu0 %v406
    %2025 = vmatpush1.msra.mxu0 %v405
    %2026 = vmatprep.subr.mxu0 %v412
    %2027 = vmatpush1.msra.mxu0 %v411
    %2028 = vmatprep.subr.mxu0 %v418
    %2029 = vmatpush1.msra.mxu0 %v417
    %2030 = vmatprep.subr.mxu0 %v424
    %2031 = vmatpush1.msra.mxu0 %v423
    %2032 = vmatprep.subr.mxu0 %v430
    %2033 = vmatpush1.msra.mxu0 %v429
    %2034 = vmatprep.subr.mxu0 %v436
    %2035 = vmatpush1.msra.mxu0 %v435
    %2036 = vmatprep.subr.mxu0 %v442
    %2037 = vmatpush1.msra.mxu0 %v441
    %2038 = vmatprep.subr.mxu0 %v448
    %2039 = vmatpush1.msra.mxu0 %v447
    %2040 = vmatprep.subr.mxu0 %v454
    %2041 = vmatpush1.msra.mxu0 %v453
    %2042 = vmatprep.subr.mxu0 %v460
    %2043 = vmatpush1.msra.mxu0 %v459
    %2044 = vmatprep.subr.mxu0 %v466
    %2045 = vmatpush1.msra.mxu0 %v465
    %2046 = vmatprep.subr.mxu0 %v472
    %2047 = vmatpush1.msra.mxu0 %v471
    %2048 = vmatprep.subr.mxu0 %v478
    %2049 = vmatpush1.msra.mxu0 %v477
    %2050 = vmatprep.subr.mxu0 %v484
    %2051 = vmatpush1.msra.mxu0 %v483
    %2052 = vmatprep.subr.mxu0 %v490
    %2053 = vmatpush1.msra.mxu0 %v489
    %2054 = vmatprep.subr.mxu0 %v496
    %2055 = vmatpush1.msra.mxu0 %v495
    %2056 = vmatprep.subr.mxu0 %v502
    %2057 = vmatpush1.msra.mxu0 %v501
    %2058 = vmatprep.subr.mxu0 %v508
    %2059 = vmatpush1.msra.mxu0 %v507
    %2060 = vmatprep.subr.mxu0 %v514
    %2061 = vmatpush1.msra.mxu0 %v513
    %2062 = vmatprep.subr.mxu0 %v520
    %2063 = vmatpush1.msra.mxu0 %v519
    %2064 = vmatprep.subr.mxu0 %v526
    %2065 = vmatpush1.msra.mxu0 %v525
    %2066 = vmatprep.subr.mxu0 %v532
    %2067 = vmatpush1.msra.mxu0 %v531
    %2068 = vmatprep.subr.mxu0 %v538
    %2069 = vmatpush1.msra.mxu0 %v537
    %2070 = vmatprep.subr.mxu0 %v544
    %2071 = vmatpush1.msra.mxu0 %v543
    %2072 = vmatprep.subr.mxu0 %v550
    %2073 = vmatpush1.msra.mxu0 %v549
    %2074 = vmatprep.mubr.f32.mxu0 %v41
    %2075 = vmatmul.mubr.f32.gmra.mrb[0].mxu0 %v62
    %v2076 = vpop.f32.mrb[0].mxu0
    %v2077 = vadd.f32 %v1988, %v2076
    %v2078 = vpop.f32.mrb[0].mxu0
    %v2079 = vadd.f32 %v1990, %v2078
    %2080 = vmatprep.mubr.f32.mxu0 %v161
    %2081 = vmatmul.mubr.f32.gmra.mrb[0].mxu0 %v160
    %v2082 = vpop.f32.mrb[0].mxu0
    %v2083 = vadd.f32 %v1994, %v2082
    %v2084 = vpop.f32.mrb[0].mxu0
    %v2085 = vadd.f32 %v1996, %v2084
    %2086 = vmatprep.mubr.f32.mxu0 %v104
    %2087 = vmatmul.mubr.f32.gmra.mrb[0].mxu0 %v122
    %v2088 = vpop.f32.mrb[0].mxu0
    %v2089 = vadd.f32 %v2000, %v2088
    %v2090 = vpop.f32.mrb[0].mxu0
    %v2091 = vadd.f32 %v2002, %v2090
    %2092 = vmatprep.mubr.f32.mxu0 %v103
    %2093 = vmatmul.mubr.f32.gmra.mrb[0].mxu0 %v121
    %v2094 = vpop.f32.mrb[0].mxu0
    %v2095 = vadd.f32 %v2006, %v2094
    %v2096 = vpop.f32.mrb[0].mxu0
    %v2097 = vadd.f32 %v2008, %v2096
    %2098 = vdwg.mxu0
    %2099 = vmatprep.subr.mxu0 %v556
    %2100 = vmatpush1.msra.mxu0 %v555
    %2101 = vmatprep.subr.mxu0 %v562
    %2102 = vmatpush1.msra.mxu0 %v561
    %2103 = vmatprep.subr.mxu0 %v568
    %2104 = vmatpush1.msra.mxu0 %v567
    %2105 = vmatprep.subr.mxu0 %v574
    %2106 = vmatpush1.msra.mxu0 %v573
    %2107 = vmatprep.subr.mxu0 %v580
    %2108 = vmatpush1.msra.mxu0 %v579
    %2109 = vmatprep.subr.mxu0 %v586
    %2110 = vmatpush1.msra.mxu0 %v585
    %2111 = vmatprep.subr.mxu0 %v592
    %2112 = vmatpush1.msra.mxu0 %v591
    %2113 = vmatprep.subr.mxu0 %v598
    %2114 = vmatpush1.msra.mxu0 %v597
    %2115 = vmatprep.subr.mxu0 %v604
    %2116 = vmatpush1.msra.mxu0 %v603
    %2117 = vmatprep.subr.mxu0 %v610
    %2118 = vmatpush1.msra.mxu0 %v609
    %2119 = vmatprep.subr.mxu0 %v616
    %2120 = vmatpush1.msra.mxu0 %v615
    %2121 = vmatprep.subr.mxu0 %v622
    %2122 = vmatpush1.msra.mxu0 %v621
    %2123 = vmatprep.subr.mxu0 %v628
    %2124 = vmatpush1.msra.mxu0 %v627
    %2125 = vmatprep.subr.mxu0 %v634
    %2126 = vmatpush1.msra.mxu0 %v633
    %2127 = vmatprep.subr.mxu0 %v640
    %2128 = vmatpush1.msra.mxu0 %v639
    %2129 = vmatprep.subr.mxu0 %v646
    %2130 = vmatpush1.msra.mxu0 %v645
    %2131 = vmatprep.subr.mxu0 %v652
    %2132 = vmatpush1.msra.mxu0 %v651
    %2133 = vmatprep.subr.mxu0 %v658
    %2134 = vmatpush1.msra.mxu0 %v657
    %2135 = vmatprep.subr.mxu0 %v664
    %2136 = vmatpush1.msra.mxu0 %v663
    %2137 = vmatprep.subr.mxu0 %v670
    %2138 = vmatpush1.msra.mxu0 %v669
    %2139 = vmatprep.subr.mxu0 %v676
    %2140 = vmatpush1.msra.mxu0 %v675
    %2141 = vmatprep.subr.mxu0 %v682
    %2142 = vmatpush1.msra.mxu0 %v681
    %2143 = vmatprep.subr.mxu0 %v688
    %2144 = vmatpush1.msra.mxu0 %v687
    %2145 = vmatprep.subr.mxu0 %v694
    %2146 = vmatpush1.msra.mxu0 %v693
    %2147 = vmatprep.subr.mxu0 %v700
    %2148 = vmatpush1.msra.mxu0 %v699
    %2149 = vmatprep.subr.mxu0 %v706
    %2150 = vmatpush1.msra.mxu0 %v705
    %2151 = vmatprep.subr.mxu0 %v712
    %2152 = vmatpush1.msra.mxu0 %v711
    %2153 = vmatprep.subr.mxu0 %v718
    %2154 = vmatpush1.msra.mxu0 %v717
    %2155 = vmatprep.subr.mxu0 %v724
    %2156 = vmatpush1.msra.mxu0 %v723
    %2157 = vmatprep.subr.mxu0 %v730
    %2158 = vmatpush1.msra.mxu0 %v729
    %2159 = vmatprep.subr.mxu0 %v736
    %2160 = vmatpush1.msra.mxu0 %v735
    %2161 = vmatprep.subr.mxu0 %v742
    %2162 = vmatpush1.msra.mxu0 %v741
    %2163 = vmatprep.mubr.f32.mxu0 %v74
    %2164 = vmatmul.mubr.f32.gmra.mrb[0].mxu0 %v69
    %v2165 = vpop.f32.mrb[0].mxu0
    %v2166 = vadd.f32 %v2077, %v2165
    %v2167 = vpop.f32.mrb[0].mxu0
    %v2168 = vadd.f32 %v2079, %v2167
    %2169 = vmatprep.mubr.f32.mxu0 %v163
    %2170 = vmatmul.mubr.f32.gmra.mrb[0].mxu0 %v162
    %v2171 = vpop.f32.mrb[0].mxu0
    %v2172 = vadd.f32 %v2083, %v2171
    %v2173 = vpop.f32.mrb[0].mxu0
    %v2174 = vadd.f32 %v2085, %v2173
    %2175 = vmatprep.mubr.f32.mxu0 %v126
    %2176 = vmatmul.mubr.f32.gmra.mrb[0].mxu0 %v124
    %v2177 = vpop.f32.mrb[0].mxu0
    %v2178 = vadd.f32 %v2089, %v2177
    %v2179 = vpop.f32.mrb[0].mxu0
    %v2180 = vadd.f32 %v2091, %v2179
    %2181 = vmatprep.mubr.f32.mxu0 %v125
    %2182 = vmatmul.mubr.f32.gmra.mrb[0].mxu0 %v123
    %v2183 = vpop.f32.mrb[0].mxu0
    %v2184 = vadd.f32 %v2095, %v2183
    %v2185 = vpop.f32.mrb[0].mxu0
    %v2186 = vadd.f32 %v2097, %v2185
    %2187 = vdwg.mxu0
    %2188 = vmatprep.subr.mxu0 %v748
    %2189 = vmatpush1.msra.mxu0 %v747
    %2190 = vmatprep.subr.mxu0 %v754
    %2191 = vmatpush1.msra.mxu0 %v753
    %2192 = vmatprep.subr.mxu0 %v760
    %2193 = vmatpush1.msra.mxu0 %v759
    %2194 = vmatprep.subr.mxu0 %v766
    %2195 = vmatpush1.msra.mxu0 %v765
    %2196 = vmatprep.subr.mxu0 %v772
    %2197 = vmatpush1.msra.mxu0 %v771
    %2198 = vmatprep.subr.mxu0 %v778
    %2199 = vmatpush1.msra.mxu0 %v777
    %2200 = vmatprep.subr.mxu0 %v784
    %2201 = vmatpush1.msra.mxu0 %v783
    %2202 = vmatprep.subr.mxu0 %v790
    %2203 = vmatpush1.msra.mxu0 %v789
    %2204 = vmatprep.subr.mxu0 %v796
    %2205 = vmatpush1.msra.mxu0 %v795
    %2206 = vmatprep.subr.mxu0 %v802
    %2207 = vmatpush1.msra.mxu0 %v801
    %2208 = vmatprep.subr.mxu0 %v808
    %2209 = vmatpush1.msra.mxu0 %v807
    %2210 = vmatprep.subr.mxu0 %v814
    %2211 = vmatpush1.msra.mxu0 %v813
    %2212 = vmatprep.subr.mxu0 %v820
    %2213 = vmatpush1.msra.mxu0 %v819
    %2214 = vmatprep.subr.mxu0 %v826
    %2215 = vmatpush1.msra.mxu0 %v825
    %2216 = vmatprep.subr.mxu0 %v832
    %2217 = vmatpush1.msra.mxu0 %v831
    %2218 = vmatprep.subr.mxu0 %v838
    %2219 = vmatpush1.msra.mxu0 %v837
    %2220 = vmatprep.subr.mxu0 %v844
    %2221 = vmatpush1.msra.mxu0 %v843
    %2222 = vmatprep.subr.mxu0 %v850
    %2223 = vmatpush1.msra.mxu0 %v849
    %2224 = vmatprep.subr.mxu0 %v856
    %2225 = vmatpush1.msra.mxu0 %v855
    %2226 = vmatprep.subr.mxu0 %v862
    %2227 = vmatpush1.msra.mxu0 %v861
    %2228 = vmatprep.subr.mxu0 %v868
    %2229 = vmatpush1.msra.mxu0 %v867
    %2230 = vmatprep.subr.mxu0 %v874
    %2231 = vmatpush1.msra.mxu0 %v873
    %2232 = vmatprep.subr.mxu0 %v880
    %2233 = vmatpush1.msra.mxu0 %v879
    %2234 = vmatprep.subr.mxu0 %v886
    %2235 = vmatpush1.msra.mxu0 %v885
    %2236 = vmatprep.subr.mxu0 %v892
    %2237 = vmatpush1.msra.mxu0 %v891
    %2238 = vmatprep.subr.mxu0 %v898
    %2239 = vmatpush1.msra.mxu0 %v897
    %2240 = vmatprep.subr.mxu0 %v904
    %2241 = vmatpush1.msra.mxu0 %v903
    %2242 = vmatprep.subr.mxu0 %v910
    %2243 = vmatpush1.msra.mxu0 %v909
    %2244 = vmatprep.subr.mxu0 %v916
    %2245 = vmatpush1.msra.mxu0 %v915
    %2246 = vmatprep.subr.mxu0 %v922
    %2247 = vmatpush1.msra.mxu0 %v921
    %2248 = vmatprep.subr.mxu0 %v928
    %2249 = vmatpush1.msra.mxu0 %v927
    %2250 = vmatprep.subr.mxu0 %v934
    %2251 = vmatpush1.msra.mxu0 %v933
    %2252 = vmatprep.mubr.f32.mxu0 %v81
    %2253 = vmatmul.mubr.f32.gmra.mrb[0].mxu0 %v43
    %v2254 = vpop.f32.mrb[0].mxu0
    %v2255 = vadd.f32 %v2166, %v2254
    %v2256 = vpop.f32.mrb[0].mxu0
    %v2257 = vadd.f32 %v2168, %v2256
    %2258 = vmatprep.mubr.f32.mxu0 %v165
    %2259 = vmatmul.mubr.f32.gmra.mrb[0].mxu0 %v164
    %v2260 = vpop.f32.mrb[0].mxu0
    %v2261 = vadd.f32 %v2172, %v2260
    %v2262 = vpop.f32.mrb[0].mxu0
    %v2263 = vadd.f32 %v2174, %v2262
    %2264 = vmatprep.mubr.f32.mxu0 %v128
    %2265 = vmatmul.mubr.f32.gmra.mrb[0].mxu0 %v112
    %v2266 = vpop.f32.mrb[0].mxu0
    %v2267 = vadd.f32 %v2178, %v2266
    %v2268 = vpop.f32.mrb[0].mxu0
    %v2269 = vadd.f32 %v2180, %v2268
    %2270 = vmatprep.mubr.f32.mxu0 %v127
    %2271 = vmatmul.mubr.f32.gmra.mrb[0].mxu0 %v111
    %v2272 = vpop.f32.mrb[0].mxu0
    %v2273 = vadd.f32 %v2184, %v2272
    %v2274 = vpop.f32.mrb[0].mxu0
    %v2275 = vadd.f32 %v2186, %v2274
    %2276 = vdwg.mxu0
    %2277 = vmatprep.subr.mxu0 %v940
    %2278 = vmatpush1.msra.mxu0 %v939
    %2279 = vmatprep.subr.mxu0 %v946
    %2280 = vmatpush1.msra.mxu0 %v945
    %2281 = vmatprep.subr.mxu0 %v952
    %2282 = vmatpush1.msra.mxu0 %v951
    %2283 = vmatprep.subr.mxu0 %v958
    %2284 = vmatpush1.msra.mxu0 %v957
    %2285 = vmatprep.subr.mxu0 %v964
    %2286 = vmatpush1.msra.mxu0 %v963
    %2287 = vmatprep.subr.mxu0 %v970
    %2288 = vmatpush1.msra.mxu0 %v969
    %2289 = vmatprep.subr.mxu0 %v976
    %2290 = vmatpush1.msra.mxu0 %v975
    %2291 = vmatprep.subr.mxu0 %v982
    %2292 = vmatpush1.msra.mxu0 %v981
    %2293 = vmatprep.subr.mxu0 %v988
    %2294 = vmatpush1.msra.mxu0 %v987
    %2295 = vmatprep.subr.mxu0 %v994
    %2296 = vmatpush1.msra.mxu0 %v993
    %2297 = vmatprep.subr.mxu0 %v1000
    %2298 = vmatpush1.msra.mxu0 %v999
    %2299 = vmatprep.subr.mxu0 %v1006
    %2300 = vmatpush1.msra.mxu0 %v1005
    %2301 = vmatprep.subr.mxu0 %v1012
    %2302 = vmatpush1.msra.mxu0 %v1011
    %2303 = vmatprep.subr.mxu0 %v1018
    %2304 = vmatpush1.msra.mxu0 %v1017
    %2305 = vmatprep.subr.mxu0 %v1024
    %2306 = vmatpush1.msra.mxu0 %v1023
    %2307 = vmatprep.subr.mxu0 %v1030
    %2308 = vmatpush1.msra.mxu0 %v1029
    %2309 = vmatprep.subr.mxu0 0.0
    %2310 = vmatpush1.msra.mxu0 0.0
    %2311 = vmatprep.subr.mxu0 0.0
    %2312 = vmatpush1.msra.mxu0 0.0
    %2313 = vmatprep.subr.mxu0 0.0
    %2314 = vmatpush1.msra.mxu0 0.0
    %2315 = vmatprep.subr.mxu0 0.0
    %2316 = vmatpush1.msra.mxu0 0.0
    %2317 = vmatprep.subr.mxu0 0.0
    %2318 = vmatpush1.msra.mxu0 0.0
    %2319 = vmatprep.subr.mxu0 0.0
    %2320 = vmatpush1.msra.mxu0 0.0
    %2321 = vmatprep.subr.mxu0 0.0
    %2322 = vmatpush1.msra.mxu0 0.0
    %2323 = vmatprep.subr.mxu0 0.0
    %2324 = vmatpush1.msra.mxu0 0.0
    %2325 = vmatprep.subr.mxu0 0.0
    %2326 = vmatpush1.msra.mxu0 0.0
    %2327 = vmatprep.subr.mxu0 0.0
    %2328 = vmatpush1.msra.mxu0 0.0
    %2329 = vmatprep.subr.mxu0 0.0
    %2330 = vmatpush1.msra.mxu0 0.0
    %2331 = vmatprep.subr.mxu0 0.0
    %2332 = vmatpush1.msra.mxu0 0.0
    %2333 = vmatprep.subr.mxu0 0.0
    %2334 = vmatpush1.msra.mxu0 0.0
    %2335 = vmatprep.subr.mxu0 0.0
    %2336 = vmatpush1.msra.mxu0 0.0
    %2337 = vmatprep.subr.mxu0 0.0
    %2338 = vmatpush1.msra.mxu0 0.0
    %2339 = vmatprep.subr.mxu0 0.0
    %2340 = vmatpush1.msra.mxu0 0.0
    %2341 = vmatprep.mubr.f32.mxu0 0.0
    %2342 = vmatmul.mubr.f32.gmra.mrb[0].mxu0 %v86
    %v2343 = vpop.f32.mrb[0].mxu0
    %v2344 = vadd.f32 %v2255, %v2343
    %v2345 = vpop.f32.mrb[0].mxu0
    %v2346 = vadd.f32 %v2257, %v2345
    %2347 = vmatprep.mubr.f32.mxu0 0.0
    %2348 = vmatmul.mubr.f32.gmra.mrb[0].mxu0 %v166
    %v2349 = vpop.f32.mrb[0].mxu0
    %v2350 = vadd.f32 %v2261, %v2349
    %v2351 = vpop.f32.mrb[0].mxu0
    %v2352 = vadd.f32 %v2263, %v2351
    %2353 = vmatprep.mubr.f32.mxu0 0.0
    %2354 = vmatmul.mubr.f32.gmra.mrb[0].mxu0 %v130
    %v2355 = vpop.f32.mrb[0].mxu0
    %v2356 = vadd.f32 %v2267, %v2355
    %v2357 = vpop.f32.mrb[0].mxu0
    %v2358 = vadd.f32 %v2269, %v2357
    %2359 = vmatprep.mubr.f32.mxu0 0.0
    %2360 = vmatmul.mubr.f32.gmra.mrb[0].mxu0 %v129
    %v2361 = vpop.f32.mrb[0].mxu0
    %v2362 = vadd.f32 %v2273, %v2361
    %v2363 = vpop.f32.mrb[0].mxu0
    %v2364 = vadd.f32 %v2275, %v2363
    %2365 = vdwg.mxu0
    %2366 = vst [vmem:[%s2] sm:$0xff] %v1454
    %2367 = vst [vmem:[%s2 + $0x8] sm:$0xff] %v1456
    %2368 = vst [vmem:[%s2 + $0x10] sm:$0xff] %v1899
    %2369 = vst [vmem:[%s2 + $0x18] sm:$0xff] %v1901
    %2370 = vst [vmem:[%s2 + $0x20] sm:$0xff] %v2344
    %2371 = vst [vmem:[%s2 + $0x28] sm:$0xff] %v2346
    %2372 = vst [vmem:[%s2 + $0x30] sm:$0x3f] %v1460
    %2373 = vst [vmem:[%s2 + $0x38] sm:$0x3f] %v1462
    %2374 = vst [vmem:[%s2 + $0x40] sm:$0x3f] %v1905
    %2375 = vst [vmem:[%s2 + $0x48] sm:$0x3f] %v1907
    %2376 = vst [vmem:[%s2 + $0x50] sm:$0x3f] %v2350
    %2377 = vst [vmem:[%s2 + $0x58] sm:$0x3f] %v2352
    %vm2396 = vcmask 1041408
    %v2397 = vrot.slane %v1460, 6
    %v2398 = vrot.slane %v1466, 6
    %v2399 = vsel %vm2396, %v2397, %v2398
    %v2400 = vrot.slane %v1462, 6
    %v2401 = vrot.slane %v1468, 6
    %v2402 = vsel %vm2396, %v2400, %v2401
    %v2403 = vrot.slane %v1905, 6
    %v2404 = vrot.slane %v1911, 6
    %v2405 = vsel %vm2396, %v2403, %v2404
    %v2406 = vrot.slane %v1907, 6
    %v2407 = vrot.slane %v1913, 6
    %v2408 = vsel %vm2396, %v2406, %v2407
    %v2409 = vrot.slane %v2350, 6
    %v2410 = vrot.slane %v2356, 6
    %v2411 = vsel %vm2396, %v2409, %v2410
    %v2412 = vrot.slane %v2352, 6
    %v2413 = vrot.slane %v2358, 6
    %v2414 = vsel %vm2396, %v2412, %v2413
    %v2415 = vrot.slane %v1472, 6
    %v2416 = vsel %vm2396, %v2398, %v2415
    %v2417 = vrot.slane %v1474, 6
    %v2418 = vsel %vm2396, %v2401, %v2417
    %v2419 = vrot.slane %v1917, 6
    %v2420 = vsel %vm2396, %v2404, %v2419
    %v2421 = vrot.slane %v1919, 6
    %v2422 = vsel %vm2396, %v2407, %v2421
    %v2423 = vrot.slane %v2362, 6
    %v2424 = vsel %vm2396, %v2410, %v2423
    %v2425 = vrot.slane %v2364, 6
    %v2426 = vsel %vm2396, %v2413, %v2425
    %s2439 = scalar_lea.vmem %s2, 96
    %2440 = vst [vmem:[%s2439] sm:$0xff] %v2399
    %2441 = vst [vmem:[%s2439 + $0x8] sm:$0xff] %v2402
    %2442 = vst [vmem:[%s2439 + $0x10] sm:$0xff] %v2405
    %2443 = vst [vmem:[%s2439 + $0x18] sm:$0xff] %v2408
    %2444 = vst [vmem:[%s2439 + $0x20] sm:$0xff] %v2411
    %2445 = vst [vmem:[%s2439 + $0x28] sm:$0xff] %v2414
    %2446 = vst [vmem:[%s2439 + $0x30] sm:$0x3f] %v2416
    %2447 = vst [vmem:[%s2439 + $0x38] sm:$0x3f] %v2418
    %2448 = vst [vmem:[%s2439 + $0x40] sm:$0x3f] %v2420
    %2449 = vst [vmem:[%s2439 + $0x48] sm:$0x3f] %v2422
    %2450 = vst [vmem:[%s2439 + $0x50] sm:$0x3f] %v2424
    %2451 = vst [vmem:[%s2439 + $0x58] sm:$0x3f] %v2426
    // Predicated region
    $region18: #{tpu_custom_call.1} parent=1 // pred_check
      _
    $region19: #{tpu_custom_call.1} parent=1 // pred_check_branch
      %2453 = sbr.rel (0) target = $region21
    $region20: #{tpu_custom_call.1} parent=1 // pred_region
      _
    $region21: #{tpu_custom_call.1} parent=1 // pred_fallthru
      _
    // Predicated region
    $region22: #{tpu_custom_call.1} parent=1 // pred_check
      _
    $region23: #{tpu_custom_call.1} parent=1 // pred_check_branch
      %2455 = sbr.rel (0) target = $region25
    $region24: #{tpu_custom_call.1} parent=1 // pred_region
      _
    $region25: #{tpu_custom_call.1} parent=1 // pred_fallthru
      _
    %2456 = vsyncpa [#allocation3], 1
    %2457 = vsyncpa [#allocation5], 1

</llo_original>
